<compile_context>
chip_gen: v6e
topology: v6e:2x2x1
jax: 0.10.0
libtpu: 0.0.40
codegen_flags: <defaults>
</compile_context>

<pallas_src>
import functools

import jax
import jax.numpy as jnp
from jax.experimental import pallas as pl
from jax.experimental.pallas import tpu as pltpu


# ---------------------------------------------------------------------------
# Fused Pallas kernel
# ---------------------------------------------------------------------------

def ppl_kernel(p1_ref, w1_ref, w2_ref, wc_ref, bc_ref, part_ref, cls_ref,
               *, N, Ho1, Wo1):
    """Fused PPL neck.

    p1_ref : (4, N*Ho1*Wo1, 4*Cin)  im2col patches of the 4 first-stage parts
    w1_ref : (4, 4*Cin, mid)        folded depthwise+pointwise first-stage weights
    w2_ref : (2, 4*mid, mid)        folded second-stage weights
    wc_ref : (2*mid, num_class)     classifier weight (pre-transposed)
    bc_ref : (1, num_class)         classifier bias
    part_ref: (N, 6*mid)            part_feats
    cls_ref : (N, num_class)        classifier scores
    """
    f32 = jnp.float32
    Wo2 = Wo1 - 1
    inv1 = 1.0 / (Ho1 * Wo1)
    inv2 = 1.0 / (Ho1 * Wo2)

    # ---- first stage: one (N*Ho1*Wo1, 4*Cin) @ (4*Cin, mid) MXU dot per part.
    blocks = {}                                   # (part, n, ho) -> (Wo1, mid) conv rows
    first_pf = [[None] * N for _ in range(4)]     # GAP of each first-stage part
    for i in range(4):
        oi = jnp.dot(p1_ref[i], w1_ref[i], preferred_element_type=f32)
        for n in range(N):
            acc = None
            for ho in range(Ho1):
                r0 = (n * Ho1 + ho) * Wo1
                blk = oi[r0:r0 + Wo1]                       # (Wo1, mid)
                blocks[(i, n, ho)] = blk
                s = jnp.sum(blk, axis=0, keepdims=True)     # (1, mid)
                acc = s if acc is None else acc + s
            first_pf[i][n] = acc * inv1

    # ---- second stage: GAP is linear -> fold it through the ConvBlock matmul:
    # second_pf[j] = mean_{ho,wo}(im2col(first_map part j)) @ w2[j]
    second_pf = [[None] * N for _ in range(2)]
    for j in range(2):
        for n in range(N):
            taps = []
            for th in range(2):                    # depthwise tap row
                srow = None                        # sum over output rows for this tap
                for ho2 in range(Ho1):
                    g = 2 * Ho1 * j + 2 * ho2 + th          # global first_map row
                    blk = blocks[(g // Ho1, n, g % Ho1)]
                    srow = blk if srow is None else srow + blk
                tot = jnp.sum(srow, axis=0, keepdims=True)            # all Wo1 cols
                taps.append((tot - srow[Wo1 - 1:Wo1]) * inv2)         # tw=0: cols 0..Wo2-1
                taps.append((tot - srow[0:1]) * inv2)                 # tw=1: cols 1..Wo1-1
            mean_patch = jnp.concatenate(taps, axis=-1)               # (1, 4*mid)
            second_pf[j][n] = jnp.dot(mean_patch, w2_ref[j],
                                      preferred_element_type=f32)     # (1, mid)

    # ---- assemble lane-dense outputs (single slab stores) ----
    part_rows, glob_rows = [], []
    for n in range(N):
        feats = ([first_pf[i][n] for i in range(4)]
                 + [second_pf[j][n] for j in range(2)])
        part_rows.append(jnp.concatenate(feats, axis=-1))             # (1, 6*mid)
        fg = (first_pf[0][n] + first_pf[1][n]
              + first_pf[2][n] + first_pf[3][n]) * 0.25               # GAP(first_map)
        sg = (second_pf[0][n] + second_pf[1][n]) * 0.5                # GAP(second_map)
        glob_rows.append(jnp.concatenate([fg, sg], axis=-1))          # (1, 2*mid)

    part_ref[...] = jnp.concatenate(part_rows, axis=0).astype(part_ref.dtype)
    glob = jnp.concatenate(glob_rows, axis=0)                         # (N, 2*mid)
    cls = jnp.dot(glob, wc_ref[...], preferred_element_type=f32) + bc_ref[...]
    cls_ref[...] = cls.astype(cls_ref.dtype)


# ---------------------------------------------------------------------------
# Wrapper: layout conversion, weight folding, im2col pre-pack, pallas_call
# ---------------------------------------------------------------------------

def _fold_convblock(w_dw, w_pw):
    """Fold depthwise 2x2 (C,1,2,2) into pointwise (Cout,C,1,1) -> (4*C, Cout).

    Row index = tap*C + c with taps ordered (0,0),(0,1),(1,0),(1,1).
    """
    C = w_dw.shape[0]
    Cout = w_pw.shape[0]
    wdw = jnp.transpose(w_dw.reshape(C, 4), (1, 0))          # (4, C)
    wpw = jnp.transpose(w_pw.reshape(Cout, C), (1, 0))       # (C, Cout)
    return (wdw[:, :, None] * wpw[None, :, :]).reshape(4 * C, Cout)


def ppl_forward(x_nchw, params, training=False):
    """PPL forward. eval -> part_feats (N, 6*mid); train -> (cls_score, part_feats)."""
    x = jnp.transpose(x_nchw, (0, 2, 3, 1))                  # NCHW -> NHWC
    N, H, W, Cin = x.shape
    assert H % 8 == 0 and W >= 3, "kernel needs even part heights and W >= 3"
    Ho1, Wo1 = H // 8, W - 1                                 # per-part conv output size
    mid = params["first"][0][1].shape[0]
    num_class = params["cls_w"].shape[0]

    # Data-independent pre-pack: im2col of the 2x2 / stride-(2,1) windows so the
    # kernel sees lane-dense (rows, 4*Cin) matrices (tap slowest, cin fastest).
    xr = x.reshape(N, 4, Ho1, 2, W, Cin)                     # (N, part, ho, th, W, C)
    taps = jnp.stack([xr[:, :, :, 0, :Wo1], xr[:, :, :, 0, 1:],
                      xr[:, :, :, 1, :Wo1], xr[:, :, :, 1, 1:]], axis=4)
    p1 = jnp.transpose(taps, (1, 0, 2, 3, 4, 5)).reshape(4, N * Ho1 * Wo1, 4 * Cin)

    w1 = jnp.stack([_fold_convblock(*params["first"][i]) for i in range(4)])
    w2 = jnp.stack([_fold_convblock(*params["second"][j]) for j in range(2)])
    wc = jnp.transpose(params["cls_w"], (1, 0))              # (2*mid, num_class)
    bc = params["cls_b"][None, :]                            # (1, num_class)

    vmem = pl.BlockSpec(memory_space=pltpu.MemorySpace.VMEM)
    part_feats, cls_score = pl.pallas_call(
        functools.partial(ppl_kernel, N=N, Ho1=Ho1, Wo1=Wo1),
        out_shape=(jax.ShapeDtypeStruct((N, 6 * mid), x.dtype),
                   jax.ShapeDtypeStruct((N, num_class), x.dtype)),
        in_specs=[vmem, vmem, vmem, vmem, vmem],
        out_specs=(vmem, vmem),
    )(p1, w1, w2, wc, bc)

    # use_bnneck=False and dropout=0 (module defaults) -> bnneck / dropout no-ops.
    # TODO(synk): BatchNorm2d bnneck path (use_bnneck=True) not implemented.
    if training:
        return cls_score, part_feats
    return part_feats


# ---------------------------------------------------------------------------
# Pure-JAX reference (lax conv) for correctness checking
# ---------------------------------------------------------------------------

def convblock_ref(x_nchw, w_dw, w_pw):
    y = jax.lax.conv_general_dilated(
        x_nchw, w_dw, window_strides=(2, 1), padding="VALID",
        feature_group_count=x_nchw.shape[1],
        dimension_numbers=("NCHW", "OIHW", "NCHW"))
    return jax.lax.conv_general_dilated(
        y, w_pw, window_strides=(1, 1), padding="VALID",
        dimension_numbers=("NCHW", "OIHW", "NCHW"))


def ppl_ref(x_nchw, params):
    gap_nchw = lambda t: jnp.mean(t, axis=(2, 3))
    parts = jnp.split(x_nchw, 4, axis=2)
    first_res = [convblock_ref(p, *params["first"][i]) for i, p in enumerate(parts)]
    first_pf = [gap_nchw(r) for r in first_res]
    first_map = jnp.concatenate(first_res, axis=2)
    first_g = gap_nchw(first_map)
    second_parts = jnp.split(first_map, 2, axis=2)
    second_res = [convblock_ref(p, *params["second"][i])
                  for i, p in enumerate(second_parts)]
    second_pf = [gap_nchw(r) for r in second_res]
    second_map = jnp.concatenate(second_res, axis=2)
    second_g = gap_nchw(second_map)
    part_feats = jnp.concatenate(first_pf + second_pf, axis=1)
    global_feat = jnp.concatenate([first_g, second_g], axis=1)
    cls_score = global_feat @ params["cls_w"].T + params["cls_b"]
    return cls_score, part_feats


# ---------------------------------------------------------------------------
# Main
# ---------------------------------------------------------------------------

if __name__ == "__main__":
    N, Cin, H, W = 2, 4, 16, 16
    mid, num_class = 32, 10

    key = jax.random.PRNGKey(0)
    keys = jax.random.split(key, 16)

    def norm(k, shape):
        return 0.1 * jax.random.normal(k, shape, jnp.float32)

    params = {
        "first": [(norm(keys[2 * i], (Cin, 1, 2, 2)),
                   norm(keys[2 * i + 1], (mid, Cin, 1, 1))) for i in range(4)],
        "second": [(norm(keys[8 + 2 * i], (mid, 1, 2, 2)),
                    norm(keys[9 + 2 * i], (mid, mid, 1, 1))) for i in range(2)],
        "cls_w": norm(keys[12], (num_class, 2 * mid)),
        "cls_b": norm(keys[13], (num_class,)),
    }

    x = jax.random.normal(keys[14], (N, Cin, H, W), jnp.float32)

    fwd = jax.jit(ppl_forward, static_argnames=("training",))

    # eval path (module.eval(): returns part_feats)
    part_feats = jax.block_until_ready(fwd(x, params, training=False))

    # training path (returns (cls_score, part_feats)) to exercise the classifier
    cls_score, part_feats_tr = fwd(x, params, training=True)
    cls_score = jax.block_until_ready(cls_score)

    # correctness check vs pure-JAX reference
    cls_ref, pf_ref = ppl_ref(x, params)
    assert part_feats.shape == (N, 6 * mid)
    assert cls_score.shape == (N, num_class)
    assert jnp.allclose(part_feats, pf_ref, atol=1e-4, rtol=1e-4)
    assert jnp.allclose(part_feats_tr, pf_ref, atol=1e-4, rtol=1e-4)
    assert jnp.allclose(cls_score, cls_ref, atol=1e-4, rtol=1e-4)

    print("KERNEL_OK")
</pallas_src>

<mosaic_0001>
module attributes {stable_mosaic.version = 11 : i64} {
  func.func @ppl_kernel(%arg0: memref<4x60x16xf32, #tpu.memory_space<vmem>>, %arg1: memref<4x16x32xf32, #tpu.memory_space<vmem>>, %arg2: memref<2x128x32xf32, #tpu.memory_space<vmem>>, %arg3: memref<64x10xf32, #tpu.memory_space<vmem>>, %arg4: memref<1x10xf32, #tpu.memory_space<vmem>>, %arg5: memref<2x192xf32, #tpu.memory_space<vmem>>, %arg6: memref<2x10xf32, #tpu.memory_space<vmem>>) attributes {dimension_semantics = [], scalar_prefetch = 0 : i64, scratch_operands = 0 : i64, tpu.core_type = #tpu.core_type<tc>} {
    %c0 = arith.constant 0 : index
    %c0_0 = arith.constant 0 : index
    %c0_1 = arith.constant 0 : index
    %0 = vector.load %arg0[%c0, %c0_0, %c0_1] : memref<4x60x16xf32, #tpu.memory_space<vmem>>, vector<1x60x16xf32>
    %1 = vector.shape_cast %0 : vector<1x60x16xf32> to vector<60x16xf32>
    %c0_2 = arith.constant 0 : index
    %c0_3 = arith.constant 0 : index
    %c0_4 = arith.constant 0 : index
    %2 = vector.load %arg1[%c0_2, %c0_3, %c0_4] : memref<4x16x32xf32, #tpu.memory_space<vmem>>, vector<1x16x32xf32>
    %3 = vector.shape_cast %2 : vector<1x16x32xf32> to vector<16x32xf32>
    %cst = arith.constant dense<0.000000e+00> : vector<60x32xf32>
    %4 = tpu.matmul %1, %3, %cst {dimension_numbers = #tpu.dot_dimension_numbers<[1], [0], [0], [1], [0, 0, 1, 1], [], []>} : vector<60x16xf32>, vector<16x32xf32>, vector<60x32xf32> -> vector<60x32xf32>
    %5 = vector.extract_strided_slice %4 {offsets = [0, 0], sizes = [15, 32], strides = [1, 1]} : vector<60x32xf32> to vector<15x32xf32>
    %cst_5 = arith.constant dense<0.000000e+00> : vector<32xf32>
    %6 = vector.multi_reduction <add>, %5, %cst_5 [0] : vector<15x32xf32> to vector<32xf32>
    %7 = vector.shape_cast %6 : vector<32xf32> to vector<1x32xf32>
    %8 = vector.extract_strided_slice %4 {offsets = [15, 0], sizes = [15, 32], strides = [1, 1]} : vector<60x32xf32> to vector<15x32xf32>
    %cst_6 = arith.constant dense<0.000000e+00> : vector<32xf32>
    %9 = vector.multi_reduction <add>, %8, %cst_6 [0] : vector<15x32xf32> to vector<32xf32>
    %10 = vector.shape_cast %9 : vector<32xf32> to vector<1x32xf32>
    %11 = arith.addf %7, %10 : vector<1x32xf32>
    %cst_7 = arith.constant 0.0333333351 : f32
    %12 = vector.broadcast %cst_7 : f32 to vector<1x32xf32>
    %13 = arith.mulf %11, %12 : vector<1x32xf32>
    %14 = vector.extract_strided_slice %4 {offsets = [30, 0], sizes = [15, 32], strides = [1, 1]} : vector<60x32xf32> to vector<15x32xf32>
    %cst_8 = arith.constant dense<0.000000e+00> : vector<32xf32>
    %15 = vector.multi_reduction <add>, %14, %cst_8 [0] : vector<15x32xf32> to vector<32xf32>
    %16 = vector.shape_cast %15 : vector<32xf32> to vector<1x32xf32>
    %17 = vector.extract_strided_slice %4 {offsets = [45, 0], sizes = [15, 32], strides = [1, 1]} : vector<60x32xf32> to vector<15x32xf32>
    %cst_9 = arith.constant dense<0.000000e+00> : vector<32xf32>
    %18 = vector.multi_reduction <add>, %17, %cst_9 [0] : vector<15x32xf32> to vector<32xf32>
    %19 = vector.shape_cast %18 : vector<32xf32> to vector<1x32xf32>
    %20 = arith.addf %16, %19 : vector<1x32xf32>
    %cst_10 = arith.constant 0.0333333351 : f32
    %21 = vector.broadcast %cst_10 : f32 to vector<1x32xf32>
    %22 = arith.mulf %20, %21 : vector<1x32xf32>
    %c1 = arith.constant 1 : index
    %c0_11 = arith.constant 0 : index
    %c0_12 = arith.constant 0 : index
    %23 = vector.load %arg0[%c1, %c0_11, %c0_12] : memref<4x60x16xf32, #tpu.memory_space<vmem>>, vector<1x60x16xf32>
    %24 = vector.shape_cast %23 : vector<1x60x16xf32> to vector<60x16xf32>
    %c1_13 = arith.constant 1 : index
    %c0_14 = arith.constant 0 : index
    %c0_15 = arith.constant 0 : index
    %25 = vector.load %arg1[%c1_13, %c0_14, %c0_15] : memref<4x16x32xf32, #tpu.memory_space<vmem>>, vector<1x16x32xf32>
    %26 = vector.shape_cast %25 : vector<1x16x32xf32> to vector<16x32xf32>
    %cst_16 = arith.constant dense<0.000000e+00> : vector<60x32xf32>
    %27 = tpu.matmul %24, %26, %cst_16 {dimension_numbers = #tpu.dot_dimension_numbers<[1], [0], [0], [1], [0, 0, 1, 1], [], []>} : vector<60x16xf32>, vector<16x32xf32>, vector<60x32xf32> -> vector<60x32xf32>
    %28 = vector.extract_strided_slice %27 {offsets = [0, 0], sizes = [15, 32], strides = [1, 1]} : vector<60x32xf32> to vector<15x32xf32>
    %cst_17 = arith.constant dense<0.000000e+00> : vector<32xf32>
    %29 = vector.multi_reduction <add>, %28, %cst_17 [0] : vector<15x32xf32> to vector<32xf32>
    %30 = vector.shape_cast %29 : vector<32xf32> to vector<1x32xf32>
    %31 = vector.extract_strided_slice %27 {offsets = [15, 0], sizes = [15, 32], strides = [1, 1]} : vector<60x32xf32> to vector<15x32xf32>
    %cst_18 = arith.constant dense<0.000000e+00> : vector<32xf32>
    %32 = vector.multi_reduction <add>, %31, %cst_18 [0] : vector<15x32xf32> to vector<32xf32>
    %33 = vector.shape_cast %32 : vector<32xf32> to vector<1x32xf32>
    %34 = arith.addf %30, %33 : vector<1x32xf32>
    %cst_19 = arith.constant 0.0333333351 : f32
    %35 = vector.broadcast %cst_19 : f32 to vector<1x32xf32>
    %36 = arith.mulf %34, %35 : vector<1x32xf32>
    %37 = vector.extract_strided_slice %27 {offsets = [30, 0], sizes = [15, 32], strides = [1, 1]} : vector<60x32xf32> to vector<15x32xf32>
    %cst_20 = arith.constant dense<0.000000e+00> : vector<32xf32>
    %38 = vector.multi_reduction <add>, %37, %cst_20 [0] : vector<15x32xf32> to vector<32xf32>
    %39 = vector.shape_cast %38 : vector<32xf32> to vector<1x32xf32>
    %40 = vector.extract_strided_slice %27 {offsets = [45, 0], sizes = [15, 32], strides = [1, 1]} : vector<60x32xf32> to vector<15x32xf32>
    %cst_21 = arith.constant dense<0.000000e+00> : vector<32xf32>
    %41 = vector.multi_reduction <add>, %40, %cst_21 [0] : vector<15x32xf32> to vector<32xf32>
    %42 = vector.shape_cast %41 : vector<32xf32> to vector<1x32xf32>
    %43 = arith.addf %39, %42 : vector<1x32xf32>
    %cst_22 = arith.constant 0.0333333351 : f32
    %44 = vector.broadcast %cst_22 : f32 to vector<1x32xf32>
    %45 = arith.mulf %43, %44 : vector<1x32xf32>
    %c2 = arith.constant 2 : index
    %c0_23 = arith.constant 0 : index
    %c0_24 = arith.constant 0 : index
    %46 = vector.load %arg0[%c2, %c0_23, %c0_24] : memref<4x60x16xf32, #tpu.memory_space<vmem>>, vector<1x60x16xf32>
    %47 = vector.shape_cast %46 : vector<1x60x16xf32> to vector<60x16xf32>
    %c2_25 = arith.constant 2 : index
    %c0_26 = arith.constant 0 : index
    %c0_27 = arith.constant 0 : index
    %48 = vector.load %arg1[%c2_25, %c0_26, %c0_27] : memref<4x16x32xf32, #tpu.memory_space<vmem>>, vector<1x16x32xf32>
    %49 = vector.shape_cast %48 : vector<1x16x32xf32> to vector<16x32xf32>
    %cst_28 = arith.constant dense<0.000000e+00> : vector<60x32xf32>
    %50 = tpu.matmul %47, %49, %cst_28 {dimension_numbers = #tpu.dot_dimension_numbers<[1], [0], [0], [1], [0, 0, 1, 1], [], []>} : vector<60x16xf32>, vector<16x32xf32>, vector<60x32xf32> -> vector<60x32xf32>
    %51 = vector.extract_strided_slice %50 {offsets = [0, 0], sizes = [15, 32], strides = [1, 1]} : vector<60x32xf32> to vector<15x32xf32>
    %cst_29 = arith.constant dense<0.000000e+00> : vector<32xf32>
    %52 = vector.multi_reduction <add>, %51, %cst_29 [0] : vector<15x32xf32> to vector<32xf32>
    %53 = vector.shape_cast %52 : vector<32xf32> to vector<1x32xf32>
    %54 = vector.extract_strided_slice %50 {offsets = [15, 0], sizes = [15, 32], strides = [1, 1]} : vector<60x32xf32> to vector<15x32xf32>
    %cst_30 = arith.constant dense<0.000000e+00> : vector<32xf32>
    %55 = vector.multi_reduction <add>, %54, %cst_30 [0] : vector<15x32xf32> to vector<32xf32>
    %56 = vector.shape_cast %55 : vector<32xf32> to vector<1x32xf32>
    %57 = arith.addf %53, %56 : vector<1x32xf32>
    %cst_31 = arith.constant 0.0333333351 : f32
    %58 = vector.broadcast %cst_31 : f32 to vector<1x32xf32>
    %59 = arith.mulf %57, %58 : vector<1x32xf32>
    %60 = vector.extract_strided_slice %50 {offsets = [30, 0], sizes = [15, 32], strides = [1, 1]} : vector<60x32xf32> to vector<15x32xf32>
    %cst_32 = arith.constant dense<0.000000e+00> : vector<32xf32>
    %61 = vector.multi_reduction <add>, %60, %cst_32 [0] : vector<15x32xf32> to vector<32xf32>
    %62 = vector.shape_cast %61 : vector<32xf32> to vector<1x32xf32>
    %63 = vector.extract_strided_slice %50 {offsets = [45, 0], sizes = [15, 32], strides = [1, 1]} : vector<60x32xf32> to vector<15x32xf32>
    %cst_33 = arith.constant dense<0.000000e+00> : vector<32xf32>
    %64 = vector.multi_reduction <add>, %63, %cst_33 [0] : vector<15x32xf32> to vector<32xf32>
    %65 = vector.shape_cast %64 : vector<32xf32> to vector<1x32xf32>
    %66 = arith.addf %62, %65 : vector<1x32xf32>
    %cst_34 = arith.constant 0.0333333351 : f32
    %67 = vector.broadcast %cst_34 : f32 to vector<1x32xf32>
    %68 = arith.mulf %66, %67 : vector<1x32xf32>
    %c3 = arith.constant 3 : index
    %c0_35 = arith.constant 0 : index
    %c0_36 = arith.constant 0 : index
    %69 = vector.load %arg0[%c3, %c0_35, %c0_36] : memref<4x60x16xf32, #tpu.memory_space<vmem>>, vector<1x60x16xf32>
    %70 = vector.shape_cast %69 : vector<1x60x16xf32> to vector<60x16xf32>
    %c3_37 = arith.constant 3 : index
    %c0_38 = arith.constant 0 : index
    %c0_39 = arith.constant 0 : index
    %71 = vector.load %arg1[%c3_37, %c0_38, %c0_39] : memref<4x16x32xf32, #tpu.memory_space<vmem>>, vector<1x16x32xf32>
    %72 = vector.shape_cast %71 : vector<1x16x32xf32> to vector<16x32xf32>
    %cst_40 = arith.constant dense<0.000000e+00> : vector<60x32xf32>
    %73 = tpu.matmul %70, %72, %cst_40 {dimension_numbers = #tpu.dot_dimension_numbers<[1], [0], [0], [1], [0, 0, 1, 1], [], []>} : vector<60x16xf32>, vector<16x32xf32>, vector<60x32xf32> -> vector<60x32xf32>
    %74 = vector.extract_strided_slice %73 {offsets = [0, 0], sizes = [15, 32], strides = [1, 1]} : vector<60x32xf32> to vector<15x32xf32>
    %cst_41 = arith.constant dense<0.000000e+00> : vector<32xf32>
    %75 = vector.multi_reduction <add>, %74, %cst_41 [0] : vector<15x32xf32> to vector<32xf32>
    %76 = vector.shape_cast %75 : vector<32xf32> to vector<1x32xf32>
    %77 = vector.extract_strided_slice %73 {offsets = [15, 0], sizes = [15, 32], strides = [1, 1]} : vector<60x32xf32> to vector<15x32xf32>
    %cst_42 = arith.constant dense<0.000000e+00> : vector<32xf32>
    %78 = vector.multi_reduction <add>, %77, %cst_42 [0] : vector<15x32xf32> to vector<32xf32>
    %79 = vector.shape_cast %78 : vector<32xf32> to vector<1x32xf32>
    %80 = arith.addf %76, %79 : vector<1x32xf32>
    %cst_43 = arith.constant 0.0333333351 : f32
    %81 = vector.broadcast %cst_43 : f32 to vector<1x32xf32>
    %82 = arith.mulf %80, %81 : vector<1x32xf32>
    %83 = vector.extract_strided_slice %73 {offsets = [30, 0], sizes = [15, 32], strides = [1, 1]} : vector<60x32xf32> to vector<15x32xf32>
    %cst_44 = arith.constant dense<0.000000e+00> : vector<32xf32>
    %84 = vector.multi_reduction <add>, %83, %cst_44 [0] : vector<15x32xf32> to vector<32xf32>
    %85 = vector.shape_cast %84 : vector<32xf32> to vector<1x32xf32>
    %86 = vector.extract_strided_slice %73 {offsets = [45, 0], sizes = [15, 32], strides = [1, 1]} : vector<60x32xf32> to vector<15x32xf32>
    %cst_45 = arith.constant dense<0.000000e+00> : vector<32xf32>
    %87 = vector.multi_reduction <add>, %86, %cst_45 [0] : vector<15x32xf32> to vector<32xf32>
    %88 = vector.shape_cast %87 : vector<32xf32> to vector<1x32xf32>
    %89 = arith.addf %85, %88 : vector<1x32xf32>
    %cst_46 = arith.constant 0.0333333351 : f32
    %90 = vector.broadcast %cst_46 : f32 to vector<1x32xf32>
    %91 = arith.mulf %89, %90 : vector<1x32xf32>
    %92 = arith.addf %5, %28 : vector<15x32xf32>
    %cst_47 = arith.constant dense<0.000000e+00> : vector<32xf32>
    %93 = vector.multi_reduction <add>, %92, %cst_47 [0] : vector<15x32xf32> to vector<32xf32>
    %94 = vector.shape_cast %93 : vector<32xf32> to vector<1x32xf32>
    %95 = vector.extract_strided_slice %92 {offsets = [14, 0], sizes = [1, 32], strides = [1, 1]} : vector<15x32xf32> to vector<1x32xf32>
    %96 = arith.subf %94, %95 : vector<1x32xf32>
    %cst_48 = arith.constant 0.0357142873 : f32
    %97 = vector.broadcast %cst_48 : f32 to vector<1x32xf32>
    %98 = arith.mulf %96, %97 : vector<1x32xf32>
    %99 = vector.extract_strided_slice %92 {offsets = [0, 0], sizes = [1, 32], strides = [1, 1]} : vector<15x32xf32> to vector<1x32xf32>
    %100 = arith.subf %94, %99 : vector<1x32xf32>
    %cst_49 = arith.constant 0.0357142873 : f32
    %101 = vector.broadcast %cst_49 : f32 to vector<1x32xf32>
    %102 = arith.mulf %100, %101 : vector<1x32xf32>
    %103 = arith.addf %8, %31 : vector<15x32xf32>
    %cst_50 = arith.constant dense<0.000000e+00> : vector<32xf32>
    %104 = vector.multi_reduction <add>, %103, %cst_50 [0] : vector<15x32xf32> to vector<32xf32>
    %105 = vector.shape_cast %104 : vector<32xf32> to vector<1x32xf32>
    %106 = vector.extract_strided_slice %103 {offsets = [14, 0], sizes = [1, 32], strides = [1, 1]} : vector<15x32xf32> to vector<1x32xf32>
    %107 = arith.subf %105, %106 : vector<1x32xf32>
    %cst_51 = arith.constant 0.0357142873 : f32
    %108 = vector.broadcast %cst_51 : f32 to vector<1x32xf32>
    %109 = arith.mulf %107, %108 : vector<1x32xf32>
    %110 = vector.extract_strided_slice %103 {offsets = [0, 0], sizes = [1, 32], strides = [1, 1]} : vector<15x32xf32> to vector<1x32xf32>
    %111 = arith.subf %105, %110 : vector<1x32xf32>
    %cst_52 = arith.constant 0.0357142873 : f32
    %112 = vector.broadcast %cst_52 : f32 to vector<1x32xf32>
    %113 = arith.mulf %111, %112 : vector<1x32xf32>
    %114 = tpu.concatenate %98, %102, %109, %113 in 1 : vector<1x32xf32>, vector<1x32xf32>, vector<1x32xf32>, vector<1x32xf32> -> vector<1x128xf32>
    %c0_53 = arith.constant 0 : index
    %c0_54 = arith.constant 0 : index
    %c0_55 = arith.constant 0 : index
    %115 = vector.load %arg2[%c0_53, %c0_54, %c0_55] : memref<2x128x32xf32, #tpu.memory_space<vmem>>, vector<1x128x32xf32>
    %116 = vector.shape_cast %115 : vector<1x128x32xf32> to vector<128x32xf32>
    %cst_56 = arith.constant dense<0.000000e+00> : vector<1x32xf32>
    %117 = tpu.matmul %114, %116, %cst_56 {dimension_numbers = #tpu.dot_dimension_numbers<[1], [0], [0], [1], [0, 0, 1, 1], [], []>} : vector<1x128xf32>, vector<128x32xf32>, vector<1x32xf32> -> vector<1x32xf32>
    %118 = arith.addf %14, %37 : vector<15x32xf32>
    %cst_57 = arith.constant dense<0.000000e+00> : vector<32xf32>
    %119 = vector.multi_reduction <add>, %118, %cst_57 [0] : vector<15x32xf32> to vector<32xf32>
    %120 = vector.shape_cast %119 : vector<32xf32> to vector<1x32xf32>
    %121 = vector.extract_strided_slice %118 {offsets = [14, 0], sizes = [1, 32], strides = [1, 1]} : vector<15x32xf32> to vector<1x32xf32>
    %122 = arith.subf %120, %121 : vector<1x32xf32>
    %cst_58 = arith.constant 0.0357142873 : f32
    %123 = vector.broadcast %cst_58 : f32 to vector<1x32xf32>
    %124 = arith.mulf %122, %123 : vector<1x32xf32>
    %125 = vector.extract_strided_slice %118 {offsets = [0, 0], sizes = [1, 32], strides = [1, 1]} : vector<15x32xf32> to vector<1x32xf32>
    %126 = arith.subf %120, %125 : vector<1x32xf32>
    %cst_59 = arith.constant 0.0357142873 : f32
    %127 = vector.broadcast %cst_59 : f32 to vector<1x32xf32>
    %128 = arith.mulf %126, %127 : vector<1x32xf32>
    %129 = arith.addf %17, %40 : vector<15x32xf32>
    %cst_60 = arith.constant dense<0.000000e+00> : vector<32xf32>
    %130 = vector.multi_reduction <add>, %129, %cst_60 [0] : vector<15x32xf32> to vector<32xf32>
    %131 = vector.shape_cast %130 : vector<32xf32> to vector<1x32xf32>
    %132 = vector.extract_strided_slice %129 {offsets = [14, 0], sizes = [1, 32], strides = [1, 1]} : vector<15x32xf32> to vector<1x32xf32>
    %133 = arith.subf %131, %132 : vector<1x32xf32>
    %cst_61 = arith.constant 0.0357142873 : f32
    %134 = vector.broadcast %cst_61 : f32 to vector<1x32xf32>
    %135 = arith.mulf %133, %134 : vector<1x32xf32>
    %136 = vector.extract_strided_slice %129 {offsets = [0, 0], sizes = [1, 32], strides = [1, 1]} : vector<15x32xf32> to vector<1x32xf32>
    %137 = arith.subf %131, %136 : vector<1x32xf32>
    %cst_62 = arith.constant 0.0357142873 : f32
    %138 = vector.broadcast %cst_62 : f32 to vector<1x32xf32>
    %139 = arith.mulf %137, %138 : vector<1x32xf32>
    %140 = tpu.concatenate %124, %128, %135, %139 in 1 : vector<1x32xf32>, vector<1x32xf32>, vector<1x32xf32>, vector<1x32xf32> -> vector<1x128xf32>
    %c0_63 = arith.constant 0 : index
    %c0_64 = arith.constant 0 : index
    %c0_65 = arith.constant 0 : index
    %141 = vector.load %arg2[%c0_63, %c0_64, %c0_65] : memref<2x128x32xf32, #tpu.memory_space<vmem>>, vector<1x128x32xf32>
    %142 = vector.shape_cast %141 : vector<1x128x32xf32> to vector<128x32xf32>
    %cst_66 = arith.constant dense<0.000000e+00> : vector<1x32xf32>
    %143 = tpu.matmul %140, %142, %cst_66 {dimension_numbers = #tpu.dot_dimension_numbers<[1], [0], [0], [1], [0, 0, 1, 1], [], []>} : vector<1x128xf32>, vector<128x32xf32>, vector<1x32xf32> -> vector<1x32xf32>
    %144 = arith.addf %51, %74 : vector<15x32xf32>
    %cst_67 = arith.constant dense<0.000000e+00> : vector<32xf32>
    %145 = vector.multi_reduction <add>, %144, %cst_67 [0] : vector<15x32xf32> to vector<32xf32>
    %146 = vector.shape_cast %145 : vector<32xf32> to vector<1x32xf32>
    %147 = vector.extract_strided_slice %144 {offsets = [14, 0], sizes = [1, 32], strides = [1, 1]} : vector<15x32xf32> to vector<1x32xf32>
    %148 = arith.subf %146, %147 : vector<1x32xf32>
    %cst_68 = arith.constant 0.0357142873 : f32
    %149 = vector.broadcast %cst_68 : f32 to vector<1x32xf32>
    %150 = arith.mulf %148, %149 : vector<1x32xf32>
    %151 = vector.extract_strided_slice %144 {offsets = [0, 0], sizes = [1, 32], strides = [1, 1]} : vector<15x32xf32> to vector<1x32xf32>
    %152 = arith.subf %146, %151 : vector<1x32xf32>
    %cst_69 = arith.constant 0.0357142873 : f32
    %153 = vector.broadcast %cst_69 : f32 to vector<1x32xf32>
    %154 = arith.mulf %152, %153 : vector<1x32xf32>
    %155 = arith.addf %54, %77 : vector<15x32xf32>
    %cst_70 = arith.constant dense<0.000000e+00> : vector<32xf32>
    %156 = vector.multi_reduction <add>, %155, %cst_70 [0] : vector<15x32xf32> to vector<32xf32>
    %157 = vector.shape_cast %156 : vector<32xf32> to vector<1x32xf32>
    %158 = vector.extract_strided_slice %155 {offsets = [14, 0], sizes = [1, 32], strides = [1, 1]} : vector<15x32xf32> to vector<1x32xf32>
    %159 = arith.subf %157, %158 : vector<1x32xf32>
    %cst_71 = arith.constant 0.0357142873 : f32
    %160 = vector.broadcast %cst_71 : f32 to vector<1x32xf32>
    %161 = arith.mulf %159, %160 : vector<1x32xf32>
    %162 = vector.extract_strided_slice %155 {offsets = [0, 0], sizes = [1, 32], strides = [1, 1]} : vector<15x32xf32> to vector<1x32xf32>
    %163 = arith.subf %157, %162 : vector<1x32xf32>
    %cst_72 = arith.constant 0.0357142873 : f32
    %164 = vector.broadcast %cst_72 : f32 to vector<1x32xf32>
    %165 = arith.mulf %163, %164 : vector<1x32xf32>
    %166 = tpu.concatenate %150, %154, %161, %165 in 1 : vector<1x32xf32>, vector<1x32xf32>, vector<1x32xf32>, vector<1x32xf32> -> vector<1x128xf32>
    %c1_73 = arith.constant 1 : index
    %c0_74 = arith.constant 0 : index
    %c0_75 = arith.constant 0 : index
    %167 = vector.load %arg2[%c1_73, %c0_74, %c0_75] : memref<2x128x32xf32, #tpu.memory_space<vmem>>, vector<1x128x32xf32>
    %168 = vector.shape_cast %167 : vector<1x128x32xf32> to vector<128x32xf32>
    %cst_76 = arith.constant dense<0.000000e+00> : vector<1x32xf32>
    %169 = tpu.matmul %166, %168, %cst_76 {dimension_numbers = #tpu.dot_dimension_numbers<[1], [0], [0], [1], [0, 0, 1, 1], [], []>} : vector<1x128xf32>, vector<128x32xf32>, vector<1x32xf32> -> vector<1x32xf32>
    %170 = arith.addf %60, %83 : vector<15x32xf32>
    %cst_77 = arith.constant dense<0.000000e+00> : vector<32xf32>
    %171 = vector.multi_reduction <add>, %170, %cst_77 [0] : vector<15x32xf32> to vector<32xf32>
    %172 = vector.shape_cast %171 : vector<32xf32> to vector<1x32xf32>
    %173 = vector.extract_strided_slice %170 {offsets = [14, 0], sizes = [1, 32], strides = [1, 1]} : vector<15x32xf32> to vector<1x32xf32>
    %174 = arith.subf %172, %173 : vector<1x32xf32>
    %cst_78 = arith.constant 0.0357142873 : f32
    %175 = vector.broadcast %cst_78 : f32 to vector<1x32xf32>
    %176 = arith.mulf %174, %175 : vector<1x32xf32>
    %177 = vector.extract_strided_slice %170 {offsets = [0, 0], sizes = [1, 32], strides = [1, 1]} : vector<15x32xf32> to vector<1x32xf32>
    %178 = arith.subf %172, %177 : vector<1x32xf32>
    %cst_79 = arith.constant 0.0357142873 : f32
    %179 = vector.broadcast %cst_79 : f32 to vector<1x32xf32>
    %180 = arith.mulf %178, %179 : vector<1x32xf32>
    %181 = arith.addf %63, %86 : vector<15x32xf32>
    %cst_80 = arith.constant dense<0.000000e+00> : vector<32xf32>
    %182 = vector.multi_reduction <add>, %181, %cst_80 [0] : vector<15x32xf32> to vector<32xf32>
    %183 = vector.shape_cast %182 : vector<32xf32> to vector<1x32xf32>
    %184 = vector.extract_strided_slice %181 {offsets = [14, 0], sizes = [1, 32], strides = [1, 1]} : vector<15x32xf32> to vector<1x32xf32>
    %185 = arith.subf %183, %184 : vector<1x32xf32>
    %cst_81 = arith.constant 0.0357142873 : f32
    %186 = vector.broadcast %cst_81 : f32 to vector<1x32xf32>
    %187 = arith.mulf %185, %186 : vector<1x32xf32>
    %188 = vector.extract_strided_slice %181 {offsets = [0, 0], sizes = [1, 32], strides = [1, 1]} : vector<15x32xf32> to vector<1x32xf32>
    %189 = arith.subf %183, %188 : vector<1x32xf32>
    %cst_82 = arith.constant 0.0357142873 : f32
    %190 = vector.broadcast %cst_82 : f32 to vector<1x32xf32>
    %191 = arith.mulf %189, %190 : vector<1x32xf32>
    %192 = tpu.concatenate %176, %180, %187, %191 in 1 : vector<1x32xf32>, vector<1x32xf32>, vector<1x32xf32>, vector<1x32xf32> -> vector<1x128xf32>
    %c1_83 = arith.constant 1 : index
    %c0_84 = arith.constant 0 : index
    %c0_85 = arith.constant 0 : index
    %193 = vector.load %arg2[%c1_83, %c0_84, %c0_85] : memref<2x128x32xf32, #tpu.memory_space<vmem>>, vector<1x128x32xf32>
    %194 = vector.shape_cast %193 : vector<1x128x32xf32> to vector<128x32xf32>
    %cst_86 = arith.constant dense<0.000000e+00> : vector<1x32xf32>
    %195 = tpu.matmul %192, %194, %cst_86 {dimension_numbers = #tpu.dot_dimension_numbers<[1], [0], [0], [1], [0, 0, 1, 1], [], []>} : vector<1x128xf32>, vector<128x32xf32>, vector<1x32xf32> -> vector<1x32xf32>
    %196 = tpu.concatenate %13, %36, %59, %82, %117, %169 in 1 : vector<1x32xf32>, vector<1x32xf32>, vector<1x32xf32>, vector<1x32xf32>, vector<1x32xf32>, vector<1x32xf32> -> vector<1x192xf32>
    %197 = arith.addf %13, %36 : vector<1x32xf32>
    %198 = arith.addf %197, %59 : vector<1x32xf32>
    %199 = arith.addf %198, %82 : vector<1x32xf32>
    %cst_87 = arith.constant 2.500000e-01 : f32
    %200 = vector.broadcast %cst_87 : f32 to vector<1x32xf32>
    %201 = arith.mulf %199, %200 : vector<1x32xf32>
    %202 = arith.addf %117, %169 : vector<1x32xf32>
    %cst_88 = arith.constant 5.000000e-01 : f32
    %203 = vector.broadcast %cst_88 : f32 to vector<1x32xf32>
    %204 = arith.mulf %202, %203 : vector<1x32xf32>
    %205 = tpu.concatenate %201, %204 in 1 : vector<1x32xf32>, vector<1x32xf32> -> vector<1x64xf32>
    %206 = tpu.concatenate %22, %45, %68, %91, %143, %195 in 1 : vector<1x32xf32>, vector<1x32xf32>, vector<1x32xf32>, vector<1x32xf32>, vector<1x32xf32>, vector<1x32xf32> -> vector<1x192xf32>
    %207 = arith.addf %22, %45 : vector<1x32xf32>
    %208 = arith.addf %207, %68 : vector<1x32xf32>
    %209 = arith.addf %208, %91 : vector<1x32xf32>
    %cst_89 = arith.constant 2.500000e-01 : f32
    %210 = vector.broadcast %cst_89 : f32 to vector<1x32xf32>
    %211 = arith.mulf %209, %210 : vector<1x32xf32>
    %212 = arith.addf %143, %195 : vector<1x32xf32>
    %cst_90 = arith.constant 5.000000e-01 : f32
    %213 = vector.broadcast %cst_90 : f32 to vector<1x32xf32>
    %214 = arith.mulf %212, %213 : vector<1x32xf32>
    %215 = tpu.concatenate %211, %214 in 1 : vector<1x32xf32>, vector<1x32xf32> -> vector<1x64xf32>
    %216 = tpu.concatenate %196, %206 in 0 : vector<1x192xf32>, vector<1x192xf32> -> vector<2x192xf32>
    %c0_91 = arith.constant 0 : index
    %c0_92 = arith.constant 0 : index
    %217 = vector.load %arg5[%c0_91, %c0_92] : memref<2x192xf32, #tpu.memory_space<vmem>>, vector<2x192xf32>
    tpu.vector_store %arg5[%c0_91, %c0_92], %216 {strides = array<i32>} : memref<2x192xf32, #tpu.memory_space<vmem>>, vector<2x192xf32>,
    %218 = tpu.concatenate %205, %215 in 0 : vector<1x64xf32>, vector<1x64xf32> -> vector<2x64xf32>
    %c0_93 = arith.constant 0 : index
    %c0_94 = arith.constant 0 : index
    %219 = vector.load %arg3[%c0_93, %c0_94] : memref<64x10xf32, #tpu.memory_space<vmem>>, vector<64x10xf32>
    %cst_95 = arith.constant dense<0.000000e+00> : vector<2x10xf32>
    %220 = tpu.matmul %218, %219, %cst_95 {dimension_numbers = #tpu.dot_dimension_numbers<[1], [0], [0], [1], [0, 0, 1, 1], [], []>} : vector<2x64xf32>, vector<64x10xf32>, vector<2x10xf32> -> vector<2x10xf32>
    %c0_96 = arith.constant 0 : index
    %c0_97 = arith.constant 0 : index
    %221 = vector.load %arg4[%c0_96, %c0_97] : memref<1x10xf32, #tpu.memory_space<vmem>>, vector<1x10xf32>
    %222 = vector.broadcast %221 : vector<1x10xf32> to vector<2x10xf32>
    %223 = arith.addf %220, %222 : vector<2x10xf32>
    %c0_98 = arith.constant 0 : index
    %c0_99 = arith.constant 0 : index
    %224 = vector.load %arg6[%c0_98, %c0_99] : memref<2x10xf32, #tpu.memory_space<vmem>>, vector<2x10xf32>
    tpu.vector_store %arg6[%c0_98, %c0_99], %223 {strides = array<i32>} : memref<2x10xf32, #tpu.memory_space<vmem>>, vector<2x10xf32>,
    return
  }
}

</mosaic_0001>

<llo_original>
// kernel: ppl_forward.1
$region0: #{ppl_forward.1}
  #allocation0 [shape = 'u32[]', space=smem, size = 0x4, offset = 0x4, fixed_abs, tag = 'smem constant byte address 0x4 - core index']
  #allocation1 [shape = 'u32[144,128]{1,0:T(1,128)}', space=vmem, size = 0x12000, scoped, tag = 'internal scratch']
  %s0 = inlined_call_operand.vmem [shape: f32[4,60,16], index: 0, kind: input, shape index: {}]
  %s1 = inlined_call_operand.vmem [shape: f32[4,16,32], index: 1, kind: input, shape index: {}]
  %s2 = inlined_call_operand.vmem [shape: f32[2,128,32], index: 2, kind: input, shape index: {}]
  %s3 = inlined_call_operand.vmem [shape: f32[64,10], index: 3, kind: input, shape index: {}]
  %s4 = inlined_call_operand.vmem [shape: f32[1,10], index: 4, kind: input, shape index: {}]
  %s5 = inlined_call_operand.hbm [shape: f32[2,192], index: 5, kind: output, shape index: {0}]
  %s6 = inlined_call_operand.hbm [shape: f32[2,10], index: 6, kind: output, shape index: {1}]
  %7 = xla_tuple %s5, %s6
  %s8 = sld [smem:[#allocation0]]
  $region38: #{ppl_forward.1} parent=0
    _
  %s10 = ssub.s32 1, %s8
  %s11 = scalar_select 0, %s10, %s8
  $region1: #{ppl_forward.1} parent=0
    #allocation2 [shape = 'u8[2048]{0}', space=vmem, size = 0x800, scoped, tag = 'output window, operand 0, single buffered']
    #allocation3 [shape = 's32[1]{0}', space=sflag, size = 0x4, scoped, tag = 'scoped memory for ppl_forward.1']
    #allocation4 [shape = 'u8[1024]{0}', space=vmem, size = 0x400, scoped, tag = 'output window, operand 1, single buffered']
    #allocation5 [shape = 's32[1]{0}', space=sflag, size = 0x4, scoped, tag = 'scoped memory for ppl_forward.1']
    %12 = vsyncpa [#allocation3], 0
    %13 = vsyncpa [#allocation5], 0
    // Predicated region
    $region2: #{ppl_forward.1} parent=1 // pred_check
      _
    $region3: #{ppl_forward.1} parent=1 // pred_check_branch
      %15 = sbr.rel (0) target = $region5
    $region4: #{ppl_forward.1} parent=1 // pred_region
      _
    $region5: #{ppl_forward.1} parent=1 // pred_fallthru
      _
    // Predicated region
    $region6: #{ppl_forward.1} parent=1 // pred_check
      _
    $region7: #{ppl_forward.1} parent=1 // pred_check_branch
      %17 = sbr.rel (0) target = $region9
    $region8: #{ppl_forward.1} parent=1 // pred_region
      _
    $region9: #{ppl_forward.1} parent=1 // pred_fallthru
      _
    // Predicated region
    $region10: #{ppl_forward.1} parent=1 // pred_check
      _
    $region11: #{ppl_forward.1} parent=1 // pred_check_branch
      %19 = sbr.rel (0) target = $region13
    $region12: #{ppl_forward.1} parent=1 // pred_region
      _
    $region13: #{ppl_forward.1} parent=1 // pred_fallthru
      _
    // Predicated region
    $region14: #{ppl_forward.1} parent=1 // pred_check
      _
    $region15: #{ppl_forward.1} parent=1 // pred_check_branch
      %21 = sbr.rel (0) target = $region17
    $region16: #{ppl_forward.1} parent=1 // pred_region
      _
    $region17: #{ppl_forward.1} parent=1 // pred_fallthru
      _
    // Predicated region
    $region18: #{ppl_forward.1} parent=1 // pred_check
      _
    $region19: #{ppl_forward.1} parent=1 // pred_check_branch
      %23 = sbr.rel (0) target = $region21
    $region20: #{ppl_forward.1} parent=1 // pred_region
      _
    $region21: #{ppl_forward.1} parent=1 // pred_fallthru
      _
    %v24 = vld [vmem:[%s0] sm:$0xff]
    %v25 = vld [vmem:[%s0 + $0x8] sm:$0xff]
    %v26 = vld [vmem:[%s0 + $0x10] sm:$0xff]
    %v27 = vld [vmem:[%s0 + $0x18] sm:$0xff]
    %v28 = vld [vmem:[%s0 + $0x20] sm:$0xff]
    %v29 = vld [vmem:[%s0 + $0x28] sm:$0xff]
    %v30 = vld [vmem:[%s0 + $0x30] sm:$0xff]
    %v31 = vld [vmem:[%s0 + $0x38] sm:$0xf]
    %v32 = vld [vmem:[%s1] sm:$0xff]
    %v33 = vld [vmem:[%s1 + $0x8] sm:$0xff]
    %vm34 = vcmask 130048
    %v36 = vsel %vm34, %v24, 0
    %v39 = vsel %vm34, %v25, 0
    %v42 = vsel %vm34, %v26, 0
    %v45 = vsel %vm34, %v27, 0
    %v48 = vsel %vm34, %v28, 0
    %v51 = vsel %vm34, %v29, 0
    %v54 = vsel %vm34, %v30, 0
    %v57 = vsel %vm34, %v31, 0
    %59 = vmatprep.subr.mxu0 0.0
    %60 = vmatpush1.msra.mxu0 0.0
    %61 = vmatprep.subr.mxu0 0.0
    %62 = vmatpush1.msra.mxu0 0.0
    %63 = vmatprep.subr.mxu0 0.0
    %64 = vmatpush1.msra.mxu0 0.0
    %65 = vmatprep.subr.mxu0 0.0
    %66 = vmatpush1.msra.mxu0 0.0
    %67 = vmatprep.subr.mxu0 0.0
    %68 = vmatpush1.msra.mxu0 0.0
    %69 = vmatprep.subr.mxu0 0.0
    %70 = vmatpush1.msra.mxu0 0.0
    %71 = vmatprep.subr.mxu0 0.0
    %72 = vmatpush1.msra.mxu0 0.0
    %73 = vmatprep.subr.mxu0 0.0
    %74 = vmatpush1.msra.mxu0 0.0
    %75 = vmatprep.subr.mxu0 0.0
    %76 = vmatpush1.msra.mxu0 0.0
    %77 = vmatprep.subr.mxu0 0.0
    %78 = vmatpush1.msra.mxu0 0.0
    %79 = vmatprep.subr.mxu0 0.0
    %80 = vmatpush1.msra.mxu0 0.0
    %81 = vmatprep.subr.mxu0 0.0
    %82 = vmatpush1.msra.mxu0 0.0
    %83 = vmatprep.subr.mxu0 0.0
    %84 = vmatpush1.msra.mxu0 0.0
    %85 = vmatprep.subr.mxu0 0.0
    %86 = vmatpush1.msra.mxu0 0.0
    %87 = vmatprep.subr.mxu0 0.0
    %88 = vmatpush1.msra.mxu0 %v33
    %89 = vmatprep.subr.mxu0 0.0
    %90 = vmatpush1.msra.mxu0 %v32
    %91 = vmatprep.subr.mxu0 0.0
    %92 = vmatpush2.msra.mxu0 0.0
    %93 = vmatprep.subr.mxu0 0.0
    %94 = vmatpush2.msra.mxu0 0.0
    %95 = vmatprep.subr.mxu0 0.0
    %96 = vmatpush2.msra.mxu0 0.0
    %97 = vmatprep.subr.mxu0 0.0
    %98 = vmatpush2.msra.mxu0 0.0
    %99 = vmatprep.subr.mxu0 0.0
    %100 = vmatpush2.msra.mxu0 0.0
    %101 = vmatprep.subr.mxu0 0.0
    %102 = vmatpush2.msra.mxu0 0.0
    %103 = vmatprep.subr.mxu0 0.0
    %104 = vmatpush2.msra.mxu0 0.0
    %105 = vmatprep.subr.mxu0 0.0
    %106 = vmatpush2.msra.mxu0 0.0
    %107 = vmatprep.subr.mxu0 0.0
    %108 = vmatpush2.msra.mxu0 0.0
    %109 = vmatprep.subr.mxu0 0.0
    %110 = vmatpush2.msra.mxu0 0.0
    %111 = vmatprep.subr.mxu0 0.0
    %112 = vmatpush2.msra.mxu0 0.0
    %113 = vmatprep.subr.mxu0 0.0
    %114 = vmatpush2.msra.mxu0 0.0
    %115 = vmatprep.subr.mxu0 0.0
    %116 = vmatpush2.msra.mxu0 0.0
    %117 = vmatprep.subr.mxu0 0.0
    %118 = vmatpush2.msra.mxu0 0.0
    %119 = vmatprep.subr.mxu0 0.0
    %120 = vmatpush2.msra.mxu0 0.0
    %121 = vmatprep.subr.mxu0 0.0
    %122 = vmatpush2.msra.mxu0 0.0
    %123 = vmatprep.mubr.f32.mxu0 0.0
    %124 = vmatmul.mubr.f32.gmra.mxu0 %v36
    %v125 = vpop.f32.mrf.mxu0
    %v126 = vadd.f32 0.0, %v125
    %v127 = vpop.f32.mrf.mxu0
    %128 = vmatprep.mubr.f32.mxu0 0.0
    %129 = vmatmul.mubr.f32.gmra.mxu0 %v39
    %v130 = vpop.f32.mrf.mxu0
    %v131 = vadd.f32 0.0, %v130
    %v132 = vpop.f32.mrf.mxu0
    %133 = vmatprep.mubr.f32.mxu0 0.0
    %134 = vmatmul.mubr.f32.gmra.mxu0 %v42
    %v135 = vpop.f32.mrf.mxu0
    %v136 = vadd.f32 0.0, %v135
    %v137 = vpop.f32.mrf.mxu0
    %138 = vmatprep.mubr.f32.mxu0 0.0
    %139 = vmatmul.mubr.f32.gmra.mxu0 %v45
    %v140 = vpop.f32.mrf.mxu0
    %v141 = vadd.f32 0.0, %v140
    %v142 = vpop.f32.mrf.mxu0
    %143 = vmatprep.mubr.f32.mxu0 0.0
    %144 = vmatmul.mubr.f32.gmra.mxu0 %v48
    %v145 = vpop.f32.mrf.mxu0
    %v146 = vadd.f32 0.0, %v145
    %v147 = vpop.f32.mrf.mxu0
    %148 = vmatprep.mubr.f32.mxu0 0.0
    %149 = vmatmul.mubr.f32.gmra.mxu0 %v51
    %v150 = vpop.f32.mrf.mxu0
    %v151 = vadd.f32 0.0, %v150
    %v152 = vpop.f32.mrf.mxu0
    %153 = vmatprep.mubr.f32.mxu0 0.0
    %154 = vmatmul.mubr.f32.gmra.mxu0 %v54
    %v155 = vpop.f32.mrf.mxu0
    %v156 = vadd.f32 0.0, %v155
    %v157 = vpop.f32.mrf.mxu0
    %158 = vmatprep.mubr.f32.mxu0 0.0
    %159 = vmatmul.mubr.f32.gmra.mxu0 %v57
    %v160 = vpop.f32.mrf.mxu0
    %v161 = vadd.f32 0.0, %v160
    %v162 = vpop.f32.mrf.mxu0
    %163 = vdwg.mxu0
    %vm164 = vcmask 261120
    %v165 = vsel %vm164, %v126, 0.0
    %vm166 = vcmask 260096
    %v167 = vsel %vm166, %v131, 0.0
    %v168 = vadd.f32 %v165, %v167
    %v169 = vrot.slane %v168, 4
    %v170 = vadd.f32 %v168, %v169
    %v171 = vrot.slane %v170, 2
    %v172 = vadd.f32 %v170, %v171
    %v173 = vrot.slane %v172, 1
    %v174 = vadd.f32 %v172, %v173
    %vm178 = vcmask 1040384
    %v179 = vrot.slane %v131, 7
    %v180 = vrot.slane %v136, 7
    %v181 = vsel %vm178, %v179, %v180
    %v182 = vrot.slane %v141, 7
    %v183 = vsel %vm178, %v180, %v182
    %v186 = vsel %vm164, %v181, 0.0
    %v187 = vsel %vm166, %v183, 0.0
    %v188 = vadd.f32 %v186, %v187
    %v189 = vrot.slane %v188, 4
    %v190 = vadd.f32 %v188, %v189
    %v191 = vrot.slane %v190, 2
    %v192 = vadd.f32 %v190, %v191
    %v193 = vrot.slane %v192, 1
    %v194 = vadd.f32 %v192, %v193
    %v195 = vadd.f32 %v174, %v194
    %v196 = vmul.f32 %v195, 0.033333335
    %vm199 = vcmask 1041408
    %v200 = vrot.slane %v141, 6
    %v201 = vrot.slane %v146, 6
    %v202 = vsel %vm199, %v200, %v201
    %v203 = vrot.slane %v151, 6
    %v204 = vsel %vm199, %v201, %v203
    %v207 = vsel %vm164, %v202, 0.0
    %v208 = vsel %vm166, %v204, 0.0
    %v209 = vadd.f32 %v207, %v208
    %v210 = vrot.slane %v209, 4
    %v211 = vadd.f32 %v209, %v210
    %v212 = vrot.slane %v211, 2
    %v213 = vadd.f32 %v211, %v212
    %v214 = vrot.slane %v213, 1
    %v215 = vadd.f32 %v213, %v214
    %vm218 = vcmask 1042432
    %v219 = vrot.slane %v151, 5
    %v220 = vrot.slane %v156, 5
    %v221 = vsel %vm218, %v219, %v220
    %v222 = vrot.slane %v161, 5
    %v223 = vsel %vm218, %v220, %v222
    %v226 = vsel %vm164, %v221, 0.0
    %v227 = vsel %vm166, %v223, 0.0
    %v228 = vadd.f32 %v226, %v227
    %v229 = vrot.slane %v228, 4
    %v230 = vadd.f32 %v228, %v229
    %v231 = vrot.slane %v230, 2
    %v232 = vadd.f32 %v230, %v231
    %v233 = vrot.slane %v232, 1
    %v234 = vadd.f32 %v232, %v233
    %v235 = vadd.f32 %v215, %v234
    %v236 = vmul.f32 %v235, 0.033333335
    %s237 = scalar_lea.vmem %s0, 64
    %v238 = vld [vmem:[%s237] sm:$0xff]
    %v239 = vld [vmem:[%s237 + $0x8] sm:$0xff]
    %v240 = vld [vmem:[%s237 + $0x10] sm:$0xff]
    %v241 = vld [vmem:[%s237 + $0x18] sm:$0xff]
    %v242 = vld [vmem:[%s237 + $0x20] sm:$0xff]
    %v243 = vld [vmem:[%s237 + $0x28] sm:$0xff]
    %v244 = vld [vmem:[%s237 + $0x30] sm:$0xff]
    %v245 = vld [vmem:[%s237 + $0x38] sm:$0xf]
    %s246 = scalar_lea.vmem %s1, 16
    %v247 = vld [vmem:[%s246] sm:$0xff]
    %v248 = vld [vmem:[%s246 + $0x8] sm:$0xff]
    %v250 = vsel %vm34, %v238, 0
    %v253 = vsel %vm34, %v239, 0
    %v256 = vsel %vm34, %v240, 0
    %v259 = vsel %vm34, %v241, 0
    %v262 = vsel %vm34, %v242, 0
    %v265 = vsel %vm34, %v243, 0
    %v268 = vsel %vm34, %v244, 0
    %v271 = vsel %vm34, %v245, 0
    %273 = vmatprep.subr.mxu0 0.0
    %274 = vmatpush1.msra.mxu0 0.0
    %275 = vmatprep.subr.mxu0 0.0
    %276 = vmatpush1.msra.mxu0 0.0
    %277 = vmatprep.subr.mxu0 0.0
    %278 = vmatpush1.msra.mxu0 0.0
    %279 = vmatprep.subr.mxu0 0.0
    %280 = vmatpush1.msra.mxu0 0.0
    %281 = vmatprep.subr.mxu0 0.0
    %282 = vmatpush1.msra.mxu0 0.0
    %283 = vmatprep.subr.mxu0 0.0
    %284 = vmatpush1.msra.mxu0 0.0
    %285 = vmatprep.subr.mxu0 0.0
    %286 = vmatpush1.msra.mxu0 0.0
    %287 = vmatprep.subr.mxu0 0.0
    %288 = vmatpush1.msra.mxu0 0.0
    %289 = vmatprep.subr.mxu0 0.0
    %290 = vmatpush1.msra.mxu0 0.0
    %291 = vmatprep.subr.mxu0 0.0
    %292 = vmatpush1.msra.mxu0 0.0
    %293 = vmatprep.subr.mxu0 0.0
    %294 = vmatpush1.msra.mxu0 0.0
    %295 = vmatprep.subr.mxu0 0.0
    %296 = vmatpush1.msra.mxu0 0.0
    %297 = vmatprep.subr.mxu0 0.0
    %298 = vmatpush1.msra.mxu0 0.0
    %299 = vmatprep.subr.mxu0 0.0
    %300 = vmatpush1.msra.mxu0 0.0
    %301 = vmatprep.subr.mxu0 0.0
    %302 = vmatpush1.msra.mxu0 %v248
    %303 = vmatprep.subr.mxu0 0.0
    %304 = vmatpush1.msra.mxu0 %v247
    %305 = vmatprep.subr.mxu0 0.0
    %306 = vmatpush2.msra.mxu0 0.0
    %307 = vmatprep.subr.mxu0 0.0
    %308 = vmatpush2.msra.mxu0 0.0
    %309 = vmatprep.subr.mxu0 0.0
    %310 = vmatpush2.msra.mxu0 0.0
    %311 = vmatprep.subr.mxu0 0.0
    %312 = vmatpush2.msra.mxu0 0.0
    %313 = vmatprep.subr.mxu0 0.0
    %314 = vmatpush2.msra.mxu0 0.0
    %315 = vmatprep.subr.mxu0 0.0
    %316 = vmatpush2.msra.mxu0 0.0
    %317 = vmatprep.subr.mxu0 0.0
    %318 = vmatpush2.msra.mxu0 0.0
    %319 = vmatprep.subr.mxu0 0.0
    %320 = vmatpush2.msra.mxu0 0.0
    %321 = vmatprep.subr.mxu0 0.0
    %322 = vmatpush2.msra.mxu0 0.0
    %323 = vmatprep.subr.mxu0 0.0
    %324 = vmatpush2.msra.mxu0 0.0
    %325 = vmatprep.subr.mxu0 0.0
    %326 = vmatpush2.msra.mxu0 0.0
    %327 = vmatprep.subr.mxu0 0.0
    %328 = vmatpush2.msra.mxu0 0.0
    %329 = vmatprep.subr.mxu0 0.0
    %330 = vmatpush2.msra.mxu0 0.0
    %331 = vmatprep.subr.mxu0 0.0
    %332 = vmatpush2.msra.mxu0 0.0
    %333 = vmatprep.subr.mxu0 0.0
    %334 = vmatpush2.msra.mxu0 0.0
    %335 = vmatprep.subr.mxu0 0.0
    %336 = vmatpush2.msra.mxu0 0.0
    %337 = vmatprep.mubr.f32.mxu0 0.0
    %338 = vmatmul.mubr.f32.gmra.mxu0 %v250
    %v339 = vpop.f32.mrf.mxu0
    %v340 = vadd.f32 0.0, %v339
    %v341 = vpop.f32.mrf.mxu0
    %342 = vmatprep.mubr.f32.mxu0 0.0
    %343 = vmatmul.mubr.f32.gmra.mxu0 %v253
    %v344 = vpop.f32.mrf.mxu0
    %v345 = vadd.f32 0.0, %v344
    %v346 = vpop.f32.mrf.mxu0
    %347 = vmatprep.mubr.f32.mxu0 0.0
    %348 = vmatmul.mubr.f32.gmra.mxu0 %v256
    %v349 = vpop.f32.mrf.mxu0
    %v350 = vadd.f32 0.0, %v349
    %v351 = vpop.f32.mrf.mxu0
    %352 = vmatprep.mubr.f32.mxu0 0.0
    %353 = vmatmul.mubr.f32.gmra.mxu0 %v259
    %v354 = vpop.f32.mrf.mxu0
    %v355 = vadd.f32 0.0, %v354
    %v356 = vpop.f32.mrf.mxu0
    %357 = vmatprep.mubr.f32.mxu0 0.0
    %358 = vmatmul.mubr.f32.gmra.mxu0 %v262
    %v359 = vpop.f32.mrf.mxu0
    %v360 = vadd.f32 0.0, %v359
    %v361 = vpop.f32.mrf.mxu0
    %362 = vmatprep.mubr.f32.mxu0 0.0
    %363 = vmatmul.mubr.f32.gmra.mxu0 %v265
    %v364 = vpop.f32.mrf.mxu0
    %v365 = vadd.f32 0.0, %v364
    %v366 = vpop.f32.mrf.mxu0
    %367 = vmatprep.mubr.f32.mxu0 0.0
    %368 = vmatmul.mubr.f32.gmra.mxu0 %v268
    %v369 = vpop.f32.mrf.mxu0
    %v370 = vadd.f32 0.0, %v369
    %v371 = vpop.f32.mrf.mxu0
    %372 = vmatprep.mubr.f32.mxu0 0.0
    %373 = vmatmul.mubr.f32.gmra.mxu0 %v271
    %v374 = vpop.f32.mrf.mxu0
    %v375 = vadd.f32 0.0, %v374
    %v376 = vpop.f32.mrf.mxu0
    %377 = vdwg.mxu0
    %v378 = vsel %vm164, %v340, 0.0
    %v379 = vsel %vm166, %v345, 0.0
    %v380 = vadd.f32 %v378, %v379
    %v381 = vrot.slane %v380, 4
    %v382 = vadd.f32 %v380, %v381
    %v383 = vrot.slane %v382, 2
    %v384 = vadd.f32 %v382, %v383
    %v385 = vrot.slane %v384, 1
    %v386 = vadd.f32 %v384, %v385
    %v390 = vrot.slane %v345, 7
    %v391 = vrot.slane %v350, 7
    %v392 = vsel %vm178, %v390, %v391
    %v393 = vrot.slane %v355, 7
    %v394 = vsel %vm178, %v391, %v393
    %v397 = vsel %vm164, %v392, 0.0
    %v398 = vsel %vm166, %v394, 0.0
    %v399 = vadd.f32 %v397, %v398
    %v400 = vrot.slane %v399, 4
    %v401 = vadd.f32 %v399, %v400
    %v402 = vrot.slane %v401, 2
    %v403 = vadd.f32 %v401, %v402
    %v404 = vrot.slane %v403, 1
    %v405 = vadd.f32 %v403, %v404
    %v406 = vadd.f32 %v386, %v405
    %v407 = vmul.f32 %v406, 0.033333335
    %v410 = vrot.slane %v355, 6
    %v411 = vrot.slane %v360, 6
    %v412 = vsel %vm199, %v410, %v411
    %v413 = vrot.slane %v365, 6
    %v414 = vsel %vm199, %v411, %v413
    %v417 = vsel %vm164, %v412, 0.0
    %v418 = vsel %vm166, %v414, 0.0
    %v419 = vadd.f32 %v417, %v418
    %v420 = vrot.slane %v419, 4
    %v421 = vadd.f32 %v419, %v420
    %v422 = vrot.slane %v421, 2
    %v423 = vadd.f32 %v421, %v422
    %v424 = vrot.slane %v423, 1
    %v425 = vadd.f32 %v423, %v424
    %v428 = vrot.slane %v365, 5
    %v429 = vrot.slane %v370, 5
    %v430 = vsel %vm218, %v428, %v429
    %v431 = vrot.slane %v375, 5
    %v432 = vsel %vm218, %v429, %v431
    %v435 = vsel %vm164, %v430, 0.0
    %v436 = vsel %vm166, %v432, 0.0
    %v437 = vadd.f32 %v435, %v436
    %v438 = vrot.slane %v437, 4
    %v439 = vadd.f32 %v437, %v438
    %v440 = vrot.slane %v439, 2
    %v441 = vadd.f32 %v439, %v440
    %v442 = vrot.slane %v441, 1
    %v443 = vadd.f32 %v441, %v442
    %v444 = vadd.f32 %v425, %v443
    %v445 = vmul.f32 %v444, 0.033333335
    %s446 = scalar_lea.vmem %s0, 128
    %v447 = vld [vmem:[%s446] sm:$0xff]
    %v448 = vld [vmem:[%s446 + $0x8] sm:$0xff]
    %v449 = vld [vmem:[%s446 + $0x10] sm:$0xff]
    %v450 = vld [vmem:[%s446 + $0x18] sm:$0xff]
    %v451 = vld [vmem:[%s446 + $0x20] sm:$0xff]
    %v452 = vld [vmem:[%s446 + $0x28] sm:$0xff]
    %v453 = vld [vmem:[%s446 + $0x30] sm:$0xff]
    %v454 = vld [vmem:[%s446 + $0x38] sm:$0xf]
    %s455 = scalar_lea.vmem %s1, 32
    %v456 = vld [vmem:[%s455] sm:$0xff]
    %v457 = vld [vmem:[%s455 + $0x8] sm:$0xff]
    %v459 = vsel %vm34, %v447, 0
    %v462 = vsel %vm34, %v448, 0
    %v465 = vsel %vm34, %v449, 0
    %v468 = vsel %vm34, %v450, 0
    %v471 = vsel %vm34, %v451, 0
    %v474 = vsel %vm34, %v452, 0
    %v477 = vsel %vm34, %v453, 0
    %v480 = vsel %vm34, %v454, 0
    %482 = vmatprep.subr.mxu0 0.0
    %483 = vmatpush1.msra.mxu0 0.0
    %484 = vmatprep.subr.mxu0 0.0
    %485 = vmatpush1.msra.mxu0 0.0
    %486 = vmatprep.subr.mxu0 0.0
    %487 = vmatpush1.msra.mxu0 0.0
    %488 = vmatprep.subr.mxu0 0.0
    %489 = vmatpush1.msra.mxu0 0.0
    %490 = vmatprep.subr.mxu0 0.0
    %491 = vmatpush1.msra.mxu0 0.0
    %492 = vmatprep.subr.mxu0 0.0
    %493 = vmatpush1.msra.mxu0 0.0
    %494 = vmatprep.subr.mxu0 0.0
    %495 = vmatpush1.msra.mxu0 0.0
    %496 = vmatprep.subr.mxu0 0.0
    %497 = vmatpush1.msra.mxu0 0.0
    %498 = vmatprep.subr.mxu0 0.0
    %499 = vmatpush1.msra.mxu0 0.0
    %500 = vmatprep.subr.mxu0 0.0
    %501 = vmatpush1.msra.mxu0 0.0
    %502 = vmatprep.subr.mxu0 0.0
    %503 = vmatpush1.msra.mxu0 0.0
    %504 = vmatprep.subr.mxu0 0.0
    %505 = vmatpush1.msra.mxu0 0.0
    %506 = vmatprep.subr.mxu0 0.0
    %507 = vmatpush1.msra.mxu0 0.0
    %508 = vmatprep.subr.mxu0 0.0
    %509 = vmatpush1.msra.mxu0 0.0
    %510 = vmatprep.subr.mxu0 0.0
    %511 = vmatpush1.msra.mxu0 %v457
    %512 = vmatprep.subr.mxu0 0.0
    %513 = vmatpush1.msra.mxu0 %v456
    %514 = vmatprep.subr.mxu0 0.0
    %515 = vmatpush2.msra.mxu0 0.0
    %516 = vmatprep.subr.mxu0 0.0
    %517 = vmatpush2.msra.mxu0 0.0
    %518 = vmatprep.subr.mxu0 0.0
    %519 = vmatpush2.msra.mxu0 0.0
    %520 = vmatprep.subr.mxu0 0.0
    %521 = vmatpush2.msra.mxu0 0.0
    %522 = vmatprep.subr.mxu0 0.0
    %523 = vmatpush2.msra.mxu0 0.0
    %524 = vmatprep.subr.mxu0 0.0
    %525 = vmatpush2.msra.mxu0 0.0
    %526 = vmatprep.subr.mxu0 0.0
    %527 = vmatpush2.msra.mxu0 0.0
    %528 = vmatprep.subr.mxu0 0.0
    %529 = vmatpush2.msra.mxu0 0.0
    %530 = vmatprep.subr.mxu0 0.0
    %531 = vmatpush2.msra.mxu0 0.0
    %532 = vmatprep.subr.mxu0 0.0
    %533 = vmatpush2.msra.mxu0 0.0
    %534 = vmatprep.subr.mxu0 0.0
    %535 = vmatpush2.msra.mxu0 0.0
    %536 = vmatprep.subr.mxu0 0.0
    %537 = vmatpush2.msra.mxu0 0.0
    %538 = vmatprep.subr.mxu0 0.0
    %539 = vmatpush2.msra.mxu0 0.0
    %540 = vmatprep.subr.mxu0 0.0
    %541 = vmatpush2.msra.mxu0 0.0
    %542 = vmatprep.subr.mxu0 0.0
    %543 = vmatpush2.msra.mxu0 0.0
    %544 = vmatprep.subr.mxu0 0.0
    %545 = vmatpush2.msra.mxu0 0.0
    %546 = vmatprep.mubr.f32.mxu0 0.0
    %547 = vmatmul.mubr.f32.gmra.mxu0 %v459
    %v548 = vpop.f32.mrf.mxu0
    %v549 = vadd.f32 0.0, %v548
    %v550 = vpop.f32.mrf.mxu0
    %551 = vmatprep.mubr.f32.mxu0 0.0
    %552 = vmatmul.mubr.f32.gmra.mxu0 %v462
    %v553 = vpop.f32.mrf.mxu0
    %v554 = vadd.f32 0.0, %v553
    %v555 = vpop.f32.mrf.mxu0
    %556 = vmatprep.mubr.f32.mxu0 0.0
    %557 = vmatmul.mubr.f32.gmra.mxu0 %v465
    %v558 = vpop.f32.mrf.mxu0
    %v559 = vadd.f32 0.0, %v558
    %v560 = vpop.f32.mrf.mxu0
    %561 = vmatprep.mubr.f32.mxu0 0.0
    %562 = vmatmul.mubr.f32.gmra.mxu0 %v468
    %v563 = vpop.f32.mrf.mxu0
    %v564 = vadd.f32 0.0, %v563
    %v565 = vpop.f32.mrf.mxu0
    %566 = vmatprep.mubr.f32.mxu0 0.0
    %567 = vmatmul.mubr.f32.gmra.mxu0 %v471
    %v568 = vpop.f32.mrf.mxu0
    %v569 = vadd.f32 0.0, %v568
    %v570 = vpop.f32.mrf.mxu0
    %571 = vmatprep.mubr.f32.mxu0 0.0
    %572 = vmatmul.mubr.f32.gmra.mxu0 %v474
    %v573 = vpop.f32.mrf.mxu0
    %v574 = vadd.f32 0.0, %v573
    %v575 = vpop.f32.mrf.mxu0
    %576 = vmatprep.mubr.f32.mxu0 0.0
    %577 = vmatmul.mubr.f32.gmra.mxu0 %v477
    %v578 = vpop.f32.mrf.mxu0
    %v579 = vadd.f32 0.0, %v578
    %v580 = vpop.f32.mrf.mxu0
    %581 = vmatprep.mubr.f32.mxu0 0.0
    %582 = vmatmul.mubr.f32.gmra.mxu0 %v480
    %v583 = vpop.f32.mrf.mxu0
    %v584 = vadd.f32 0.0, %v583
    %v585 = vpop.f32.mrf.mxu0
    %586 = vdwg.mxu0
    %v587 = vsel %vm164, %v549, 0.0
    %v588 = vsel %vm166, %v554, 0.0
    %v589 = vadd.f32 %v587, %v588
    %v590 = vrot.slane %v589, 4
    %v591 = vadd.f32 %v589, %v590
    %v592 = vrot.slane %v591, 2
    %v593 = vadd.f32 %v591, %v592
    %v594 = vrot.slane %v593, 1
    %v595 = vadd.f32 %v593, %v594
    %v599 = vrot.slane %v554, 7
    %v600 = vrot.slane %v559, 7
    %v601 = vsel %vm178, %v599, %v600
    %v602 = vrot.slane %v564, 7
    %v603 = vsel %vm178, %v600, %v602
    %v606 = vsel %vm164, %v601, 0.0
    %v607 = vsel %vm166, %v603, 0.0
    %v608 = vadd.f32 %v606, %v607
    %v609 = vrot.slane %v608, 4
    %v610 = vadd.f32 %v608, %v609
    %v611 = vrot.slane %v610, 2
    %v612 = vadd.f32 %v610, %v611
    %v613 = vrot.slane %v612, 1
    %v614 = vadd.f32 %v612, %v613
    %v615 = vadd.f32 %v595, %v614
    %v616 = vmul.f32 %v615, 0.033333335
    %v619 = vrot.slane %v564, 6
    %v620 = vrot.slane %v569, 6
    %v621 = vsel %vm199, %v619, %v620
    %v622 = vrot.slane %v574, 6
    %v623 = vsel %vm199, %v620, %v622
    %v626 = vsel %vm164, %v621, 0.0
    %v627 = vsel %vm166, %v623, 0.0
    %v628 = vadd.f32 %v626, %v627
    %v629 = vrot.slane %v628, 4
    %v630 = vadd.f32 %v628, %v629
    %v631 = vrot.slane %v630, 2
    %v632 = vadd.f32 %v630, %v631
    %v633 = vrot.slane %v632, 1
    %v634 = vadd.f32 %v632, %v633
    %v637 = vrot.slane %v574, 5
    %v638 = vrot.slane %v579, 5
    %v639 = vsel %vm218, %v637, %v638
    %v640 = vrot.slane %v584, 5
    %v641 = vsel %vm218, %v638, %v640
    %v644 = vsel %vm164, %v639, 0.0
    %v645 = vsel %vm166, %v641, 0.0
    %v646 = vadd.f32 %v644, %v645
    %v647 = vrot.slane %v646, 4
    %v648 = vadd.f32 %v646, %v647
    %v649 = vrot.slane %v648, 2
    %v650 = vadd.f32 %v648, %v649
    %v651 = vrot.slane %v650, 1
    %v652 = vadd.f32 %v650, %v651
    %v653 = vadd.f32 %v634, %v652
    %v654 = vmul.f32 %v653, 0.033333335
    %s655 = scalar_lea.vmem %s0, 192
    %v656 = vld [vmem:[%s655] sm:$0xff]
    %v657 = vld [vmem:[%s655 + $0x8] sm:$0xff]
    %v658 = vld [vmem:[%s655 + $0x10] sm:$0xff]
    %v659 = vld [vmem:[%s655 + $0x18] sm:$0xff]
    %v660 = vld [vmem:[%s655 + $0x20] sm:$0xff]
    %v661 = vld [vmem:[%s655 + $0x28] sm:$0xff]
    %v662 = vld [vmem:[%s655 + $0x30] sm:$0xff]
    %v663 = vld [vmem:[%s655 + $0x38] sm:$0xf]
    %s664 = scalar_lea.vmem %s1, 48
    %v665 = vld [vmem:[%s664] sm:$0xff]
    %v666 = vld [vmem:[%s664 + $0x8] sm:$0xff]
    %v668 = vsel %vm34, %v656, 0
    %v671 = vsel %vm34, %v657, 0
    %v674 = vsel %vm34, %v658, 0
    %v677 = vsel %vm34, %v659, 0
    %v680 = vsel %vm34, %v660, 0
    %v683 = vsel %vm34, %v661, 0
    %v686 = vsel %vm34, %v662, 0
    %v689 = vsel %vm34, %v663, 0
    %691 = vmatprep.subr.mxu0 0.0
    %692 = vmatpush1.msra.mxu0 0.0
    %693 = vmatprep.subr.mxu0 0.0
    %694 = vmatpush1.msra.mxu0 0.0
    %695 = vmatprep.subr.mxu0 0.0
    %696 = vmatpush1.msra.mxu0 0.0
    %697 = vmatprep.subr.mxu0 0.0
    %698 = vmatpush1.msra.mxu0 0.0
    %699 = vmatprep.subr.mxu0 0.0
    %700 = vmatpush1.msra.mxu0 0.0
    %701 = vmatprep.subr.mxu0 0.0
    %702 = vmatpush1.msra.mxu0 0.0
    %703 = vmatprep.subr.mxu0 0.0
    %704 = vmatpush1.msra.mxu0 0.0
    %705 = vmatprep.subr.mxu0 0.0
    %706 = vmatpush1.msra.mxu0 0.0
    %707 = vmatprep.subr.mxu0 0.0
    %708 = vmatpush1.msra.mxu0 0.0
    %709 = vmatprep.subr.mxu0 0.0
    %710 = vmatpush1.msra.mxu0 0.0
    %711 = vmatprep.subr.mxu0 0.0
    %712 = vmatpush1.msra.mxu0 0.0
    %713 = vmatprep.subr.mxu0 0.0
    %714 = vmatpush1.msra.mxu0 0.0
    %715 = vmatprep.subr.mxu0 0.0
    %716 = vmatpush1.msra.mxu0 0.0
    %717 = vmatprep.subr.mxu0 0.0
    %718 = vmatpush1.msra.mxu0 0.0
    %719 = vmatprep.subr.mxu0 0.0
    %720 = vmatpush1.msra.mxu0 %v666
    %721 = vmatprep.subr.mxu0 0.0
    %722 = vmatpush1.msra.mxu0 %v665
    %723 = vmatprep.subr.mxu0 0.0
    %724 = vmatpush2.msra.mxu0 0.0
    %725 = vmatprep.subr.mxu0 0.0
    %726 = vmatpush2.msra.mxu0 0.0
    %727 = vmatprep.subr.mxu0 0.0
    %728 = vmatpush2.msra.mxu0 0.0
    %729 = vmatprep.subr.mxu0 0.0
    %730 = vmatpush2.msra.mxu0 0.0
    %731 = vmatprep.subr.mxu0 0.0
    %732 = vmatpush2.msra.mxu0 0.0
    %733 = vmatprep.subr.mxu0 0.0
    %734 = vmatpush2.msra.mxu0 0.0
    %735 = vmatprep.subr.mxu0 0.0
    %736 = vmatpush2.msra.mxu0 0.0
    %737 = vmatprep.subr.mxu0 0.0
    %738 = vmatpush2.msra.mxu0 0.0
    %739 = vmatprep.subr.mxu0 0.0
    %740 = vmatpush2.msra.mxu0 0.0
    %741 = vmatprep.subr.mxu0 0.0
    %742 = vmatpush2.msra.mxu0 0.0
    %743 = vmatprep.subr.mxu0 0.0
    %744 = vmatpush2.msra.mxu0 0.0
    %745 = vmatprep.subr.mxu0 0.0
    %746 = vmatpush2.msra.mxu0 0.0
    %747 = vmatprep.subr.mxu0 0.0
    %748 = vmatpush2.msra.mxu0 0.0
    %749 = vmatprep.subr.mxu0 0.0
    %750 = vmatpush2.msra.mxu0 0.0
    %751 = vmatprep.subr.mxu0 0.0
    %752 = vmatpush2.msra.mxu0 0.0
    %753 = vmatprep.subr.mxu0 0.0
    %754 = vmatpush2.msra.mxu0 0.0
    %755 = vmatprep.mubr.f32.mxu0 0.0
    %756 = vmatmul.mubr.f32.gmra.mxu0 %v668
    %v757 = vpop.f32.mrf.mxu0
    %v758 = vadd.f32 0.0, %v757
    %v759 = vpop.f32.mrf.mxu0
    %760 = vmatprep.mubr.f32.mxu0 0.0
    %761 = vmatmul.mubr.f32.gmra.mxu0 %v671
    %v762 = vpop.f32.mrf.mxu0
    %v763 = vadd.f32 0.0, %v762
    %v764 = vpop.f32.mrf.mxu0
    %765 = vmatprep.mubr.f32.mxu0 0.0
    %766 = vmatmul.mubr.f32.gmra.mxu0 %v674
    %v767 = vpop.f32.mrf.mxu0
    %v768 = vadd.f32 0.0, %v767
    %v769 = vpop.f32.mrf.mxu0
    %770 = vmatprep.mubr.f32.mxu0 0.0
    %771 = vmatmul.mubr.f32.gmra.mxu0 %v677
    %v772 = vpop.f32.mrf.mxu0
    %v773 = vadd.f32 0.0, %v772
    %v774 = vpop.f32.mrf.mxu0
    %775 = vmatprep.mubr.f32.mxu0 0.0
    %776 = vmatmul.mubr.f32.gmra.mxu0 %v680
    %v777 = vpop.f32.mrf.mxu0
    %v778 = vadd.f32 0.0, %v777
    %v779 = vpop.f32.mrf.mxu0
    %780 = vmatprep.mubr.f32.mxu0 0.0
    %781 = vmatmul.mubr.f32.gmra.mxu0 %v683
    %v782 = vpop.f32.mrf.mxu0
    %v783 = vadd.f32 0.0, %v782
    %v784 = vpop.f32.mrf.mxu0
    %785 = vmatprep.mubr.f32.mxu0 0.0
    %786 = vmatmul.mubr.f32.gmra.mxu0 %v686
    %v787 = vpop.f32.mrf.mxu0
    %v788 = vadd.f32 0.0, %v787
    %v789 = vpop.f32.mrf.mxu0
    %790 = vmatprep.mubr.f32.mxu0 0.0
    %791 = vmatmul.mubr.f32.gmra.mxu0 %v689
    %v792 = vpop.f32.mrf.mxu0
    %v793 = vadd.f32 0.0, %v792
    %v794 = vpop.f32.mrf.mxu0
    %795 = vdwg.mxu0
    %v796 = vsel %vm164, %v758, 0.0
    %v797 = vsel %vm166, %v763, 0.0
    %v798 = vadd.f32 %v796, %v797
    %v799 = vrot.slane %v798, 4
    %v800 = vadd.f32 %v798, %v799
    %v801 = vrot.slane %v800, 2
    %v802 = vadd.f32 %v800, %v801
    %v803 = vrot.slane %v802, 1
    %v804 = vadd.f32 %v802, %v803
    %v808 = vrot.slane %v763, 7
    %v809 = vrot.slane %v768, 7
    %v810 = vsel %vm178, %v808, %v809
    %v811 = vrot.slane %v773, 7
    %v812 = vsel %vm178, %v809, %v811
    %v815 = vsel %vm164, %v810, 0.0
    %v816 = vsel %vm166, %v812, 0.0
    %v817 = vadd.f32 %v815, %v816
    %v818 = vrot.slane %v817, 4
    %v819 = vadd.f32 %v817, %v818
    %v820 = vrot.slane %v819, 2
    %v821 = vadd.f32 %v819, %v820
    %v822 = vrot.slane %v821, 1
    %v823 = vadd.f32 %v821, %v822
    %v824 = vadd.f32 %v804, %v823
    %v825 = vmul.f32 %v824, 0.033333335
    %v828 = vrot.slane %v773, 6
    %v829 = vrot.slane %v778, 6
    %v830 = vsel %vm199, %v828, %v829
    %v831 = vrot.slane %v783, 6
    %v832 = vsel %vm199, %v829, %v831
    %v835 = vsel %vm164, %v830, 0.0
    %v836 = vsel %vm166, %v832, 0.0
    %v837 = vadd.f32 %v835, %v836
    %v838 = vrot.slane %v837, 4
    %v839 = vadd.f32 %v837, %v838
    %v840 = vrot.slane %v839, 2
    %v841 = vadd.f32 %v839, %v840
    %v842 = vrot.slane %v841, 1
    %v843 = vadd.f32 %v841, %v842
    %v846 = vrot.slane %v783, 5
    %v847 = vrot.slane %v788, 5
    %v848 = vsel %vm218, %v846, %v847
    %v849 = vrot.slane %v793, 5
    %v850 = vsel %vm218, %v847, %v849
    %v853 = vsel %vm164, %v848, 0.0
    %v854 = vsel %vm166, %v850, 0.0
    %v855 = vadd.f32 %v853, %v854
    %v856 = vrot.slane %v855, 4
    %v857 = vadd.f32 %v855, %v856
    %v858 = vrot.slane %v857, 2
    %v859 = vadd.f32 %v857, %v858
    %v860 = vrot.slane %v859, 1
    %v861 = vadd.f32 %v859, %v860
    %v862 = vadd.f32 %v843, %v861
    %v863 = vmul.f32 %v862, 0.033333335
    %v864 = vadd.f32 %v126, %v340
    %v865 = vadd.f32 %v131, %v345
    %v866 = vsel %vm164, %v864, 0.0
    %v867 = vsel %vm166, %v865, 0.0
    %v868 = vadd.f32 %v866, %v867
    %v869 = vrot.slane %v868, 4
    %v870 = vadd.f32 %v868, %v869
    %v871 = vrot.slane %v870, 2
    %v872 = vadd.f32 %v870, %v871
    %v873 = vrot.slane %v872, 1
    %v874 = vadd.f32 %v872, %v873
    %v875 = vsub.f32 %v874, %v865
    %v876 = vmul.f32 %v875, 0.035714287
    %v877 = vsub.f32 %v874, %v864
    %v878 = vmul.f32 %v877, 0.035714287
    %v879 = vadd.f32 %v136, %v350
    %v880 = vadd.f32 %v141, %v355
    %v884 = vrot.slane %v865, 7
    %v885 = vrot.slane %v879, 7
    %v886 = vsel %vm178, %v884, %v885
    %v887 = vrot.slane %v880, 7
    %v888 = vsel %vm178, %v885, %v887
    %v891 = vsel %vm164, %v886, 0.0
    %v892 = vsel %vm166, %v888, 0.0
    %v893 = vadd.f32 %v891, %v892
    %v894 = vrot.slane %v893, 4
    %v895 = vadd.f32 %v893, %v894
    %v896 = vrot.slane %v895, 2
    %v897 = vadd.f32 %v895, %v896
    %v898 = vrot.slane %v897, 1
    %v899 = vadd.f32 %v897, %v898
    %v900 = vsub.f32 %v899, %v880
    %v901 = vmul.f32 %v900, 0.035714287
    %v902 = vsub.f32 %v899, %v865
    %v903 = vmul.f32 %v902, 0.035714287
    %v905 = vrot.slane %v878, 2
    %906 = vrot.lane.b32.xlu0 %v905, 32
    %v907 = vpop.permute.xlu0 %906
    %v910 = vrot.slane %v901, 7
    %911 = vrot.lane.b32.xlu0 %v910, 64
    %v912 = vpop.permute.xlu0 %911
    %v915 = vrot.slane %v903, 1
    %916 = vrot.lane.b32.xlu0 %v915, 96
    %v917 = vpop.permute.xlu0 %916
    %v919 = vsel %vm164, %v876, %v907
    %vm920 = vcmask 523264
    %v921 = vsel %vm920, %v919, %v912
    %vm922 = vcmask 785408
    %v923 = vsel %vm922, %v921, %v917
    %v924 = vld [vmem:[%s2] sm:$0xff]
    %v925 = vld [vmem:[%s2 + $0x8] sm:$0xff]
    %v926 = vld [vmem:[%s2 + $0x10] sm:$0xff]
    %v927 = vld [vmem:[%s2 + $0x18] sm:$0xff]
    %v928 = vld [vmem:[%s2 + $0x20] sm:$0xff]
    %v929 = vld [vmem:[%s2 + $0x28] sm:$0xff]
    %v930 = vld [vmem:[%s2 + $0x30] sm:$0xff]
    %v931 = vld [vmem:[%s2 + $0x38] sm:$0xff]
    %v932 = vld [vmem:[%s2 + $0x40] sm:$0xff]
    %v933 = vld [vmem:[%s2 + $0x48] sm:$0xff]
    %v934 = vld [vmem:[%s2 + $0x50] sm:$0xff]
    %v935 = vld [vmem:[%s2 + $0x58] sm:$0xff]
    %v936 = vld [vmem:[%s2 + $0x60] sm:$0xff]
    %v937 = vld [vmem:[%s2 + $0x68] sm:$0xff]
    %v938 = vld [vmem:[%s2 + $0x70] sm:$0xff]
    %v939 = vld [vmem:[%s2 + $0x78] sm:$0xff]
    %v941 = vrot.slane %v923, 6
    %943 = vmatprep.subr.mxu0 0.0
    %944 = vmatpush1.msra.mxu0 %v939
    %945 = vmatprep.subr.mxu0 0.0
    %946 = vmatpush1.msra.mxu0 %v938
    %947 = vmatprep.subr.mxu0 0.0
    %948 = vmatpush1.msra.mxu0 %v937
    %949 = vmatprep.subr.mxu0 0.0
    %950 = vmatpush1.msra.mxu0 %v936
    %951 = vmatprep.subr.mxu0 0.0
    %952 = vmatpush1.msra.mxu0 %v935
    %953 = vmatprep.subr.mxu0 0.0
    %954 = vmatpush1.msra.mxu0 %v934
    %955 = vmatprep.subr.mxu0 0.0
    %956 = vmatpush1.msra.mxu0 %v933
    %957 = vmatprep.subr.mxu0 0.0
    %958 = vmatpush1.msra.mxu0 %v932
    %959 = vmatprep.subr.mxu0 0.0
    %960 = vmatpush1.msra.mxu0 %v931
    %961 = vmatprep.subr.mxu0 0.0
    %962 = vmatpush1.msra.mxu0 %v930
    %963 = vmatprep.subr.mxu0 0.0
    %964 = vmatpush1.msra.mxu0 %v929
    %965 = vmatprep.subr.mxu0 0.0
    %966 = vmatpush1.msra.mxu0 %v928
    %967 = vmatprep.subr.mxu0 0.0
    %968 = vmatpush1.msra.mxu0 %v927
    %969 = vmatprep.subr.mxu0 0.0
    %970 = vmatpush1.msra.mxu0 %v926
    %971 = vmatprep.subr.mxu0 0.0
    %972 = vmatpush1.msra.mxu0 %v925
    %973 = vmatprep.subr.mxu0 0.0
    %974 = vmatpush1.msra.mxu0 %v924
    %975 = vmatprep.subr.mxu0 0.0
    %976 = vmatpush2.msra.mxu0 0.0
    %977 = vmatprep.subr.mxu0 0.0
    %978 = vmatpush2.msra.mxu0 0.0
    %979 = vmatprep.subr.mxu0 0.0
    %980 = vmatpush2.msra.mxu0 0.0
    %981 = vmatprep.subr.mxu0 0.0
    %982 = vmatpush2.msra.mxu0 0.0
    %983 = vmatprep.subr.mxu0 0.0
    %984 = vmatpush2.msra.mxu0 0.0
    %985 = vmatprep.subr.mxu0 0.0
    %986 = vmatpush2.msra.mxu0 0.0
    %987 = vmatprep.subr.mxu0 0.0
    %988 = vmatpush2.msra.mxu0 0.0
    %989 = vmatprep.subr.mxu0 0.0
    %990 = vmatpush2.msra.mxu0 0.0
    %991 = vmatprep.subr.mxu0 0.0
    %992 = vmatpush2.msra.mxu0 0.0
    %993 = vmatprep.subr.mxu0 0.0
    %994 = vmatpush2.msra.mxu0 0.0
    %995 = vmatprep.subr.mxu0 0.0
    %996 = vmatpush2.msra.mxu0 0.0
    %997 = vmatprep.subr.mxu0 0.0
    %998 = vmatpush2.msra.mxu0 0.0
    %999 = vmatprep.subr.mxu0 0.0
    %1000 = vmatpush2.msra.mxu0 0.0
    %1001 = vmatprep.subr.mxu0 0.0
    %1002 = vmatpush2.msra.mxu0 0.0
    %1003 = vmatprep.subr.mxu0 0.0
    %1004 = vmatpush2.msra.mxu0 0.0
    %1005 = vmatprep.subr.mxu0 0.0
    %1006 = vmatpush2.msra.mxu0 0.0
    %1007 = vmatprep.mubr.f32.mxu0 0.0
    %1008 = vmatmul.mubr.f32.gmra.mxu0 %v941
    %v1009 = vpop.f32.mrf.mxu0
    %v1010 = vadd.f32 0.0, %v1009
    %v1011 = vpop.f32.mrf.mxu0
    %1012 = vdwg.mxu0
    %v1013 = vadd.f32 %v146, %v360
    %v1014 = vadd.f32 %v151, %v365
    %v1017 = vrot.slane %v880, 6
    %v1018 = vrot.slane %v1013, 6
    %v1019 = vsel %vm199, %v1017, %v1018
    %v1020 = vrot.slane %v1014, 6
    %v1021 = vsel %vm199, %v1018, %v1020
    %v1024 = vsel %vm164, %v1019, 0.0
    %v1025 = vsel %vm166, %v1021, 0.0
    %v1026 = vadd.f32 %v1024, %v1025
    %v1027 = vrot.slane %v1026, 4
    %v1028 = vadd.f32 %v1026, %v1027
    %v1029 = vrot.slane %v1028, 2
    %v1030 = vadd.f32 %v1028, %v1029
    %v1031 = vrot.slane %v1030, 1
    %v1032 = vadd.f32 %v1030, %v1031
    %v1033 = vsub.f32 %v1032, %v1014
    %v1034 = vmul.f32 %v1033, 0.035714287
    %v1035 = vsub.f32 %v1032, %v880
    %v1036 = vmul.f32 %v1035, 0.035714287
    %v1037 = vadd.f32 %v156, %v370
    %v1038 = vadd.f32 %v161, %v375
    %v1041 = vrot.slane %v1014, 5
    %v1042 = vrot.slane %v1037, 5
    %v1043 = vsel %vm218, %v1041, %v1042
    %v1044 = vrot.slane %v1038, 5
    %v1045 = vsel %vm218, %v1042, %v1044
    %v1048 = vsel %vm164, %v1043, 0.0
    %v1049 = vsel %vm166, %v1045, 0.0
    %v1050 = vadd.f32 %v1048, %v1049
    %v1051 = vrot.slane %v1050, 4
    %v1052 = vadd.f32 %v1050, %v1051
    %v1053 = vrot.slane %v1052, 2
    %v1054 = vadd.f32 %v1052, %v1053
    %v1055 = vrot.slane %v1054, 1
    %v1056 = vadd.f32 %v1054, %v1055
    %v1057 = vsub.f32 %v1056, %v1038
    %v1058 = vmul.f32 %v1057, 0.035714287
    %v1059 = vsub.f32 %v1056, %v1014
    %v1060 = vmul.f32 %v1059, 0.035714287
    %v1062 = vrot.slane %v1036, 2
    %1063 = vrot.lane.b32.xlu0 %v1062, 32
    %v1064 = vpop.permute.xlu0 %1063
    %v1067 = vrot.slane %v1058, 7
    %1068 = vrot.lane.b32.xlu0 %v1067, 64
    %v1069 = vpop.permute.xlu0 %1068
    %v1072 = vrot.slane %v1060, 1
    %1073 = vrot.lane.b32.xlu0 %v1072, 96
    %v1074 = vpop.permute.xlu0 %1073
    %v1076 = vsel %vm164, %v1034, %v1064
    %v1077 = vsel %vm920, %v1076, %v1069
    %v1078 = vsel %vm922, %v1077, %v1074
    %v1080 = vrot.slane %v1078, 4
    %1082 = vmatprep.subr.mxu0 0.0
    %1083 = vmatpush1.msra.mxu0 %v939
    %1084 = vmatprep.subr.mxu0 0.0
    %1085 = vmatpush1.msra.mxu0 %v938
    %1086 = vmatprep.subr.mxu0 0.0
    %1087 = vmatpush1.msra.mxu0 %v937
    %1088 = vmatprep.subr.mxu0 0.0
    %1089 = vmatpush1.msra.mxu0 %v936
    %1090 = vmatprep.subr.mxu0 0.0
    %1091 = vmatpush1.msra.mxu0 %v935
    %1092 = vmatprep.subr.mxu0 0.0
    %1093 = vmatpush1.msra.mxu0 %v934
    %1094 = vmatprep.subr.mxu0 0.0
    %1095 = vmatpush1.msra.mxu0 %v933
    %1096 = vmatprep.subr.mxu0 0.0
    %1097 = vmatpush1.msra.mxu0 %v932
    %1098 = vmatprep.subr.mxu0 0.0
    %1099 = vmatpush1.msra.mxu0 %v931
    %1100 = vmatprep.subr.mxu0 0.0
    %1101 = vmatpush1.msra.mxu0 %v930
    %1102 = vmatprep.subr.mxu0 0.0
    %1103 = vmatpush1.msra.mxu0 %v929
    %1104 = vmatprep.subr.mxu0 0.0
    %1105 = vmatpush1.msra.mxu0 %v928
    %1106 = vmatprep.subr.mxu0 0.0
    %1107 = vmatpush1.msra.mxu0 %v927
    %1108 = vmatprep.subr.mxu0 0.0
    %1109 = vmatpush1.msra.mxu0 %v926
    %1110 = vmatprep.subr.mxu0 0.0
    %1111 = vmatpush1.msra.mxu0 %v925
    %1112 = vmatprep.subr.mxu0 0.0
    %1113 = vmatpush1.msra.mxu0 %v924
    %1114 = vmatprep.subr.mxu0 0.0
    %1115 = vmatpush2.msra.mxu0 0.0
    %1116 = vmatprep.subr.mxu0 0.0
    %1117 = vmatpush2.msra.mxu0 0.0
    %1118 = vmatprep.subr.mxu0 0.0
    %1119 = vmatpush2.msra.mxu0 0.0
    %1120 = vmatprep.subr.mxu0 0.0
    %1121 = vmatpush2.msra.mxu0 0.0
    %1122 = vmatprep.subr.mxu0 0.0
    %1123 = vmatpush2.msra.mxu0 0.0
    %1124 = vmatprep.subr.mxu0 0.0
    %1125 = vmatpush2.msra.mxu0 0.0
    %1126 = vmatprep.subr.mxu0 0.0
    %1127 = vmatpush2.msra.mxu0 0.0
    %1128 = vmatprep.subr.mxu0 0.0
    %1129 = vmatpush2.msra.mxu0 0.0
    %1130 = vmatprep.subr.mxu0 0.0
    %1131 = vmatpush2.msra.mxu0 0.0
    %1132 = vmatprep.subr.mxu0 0.0
    %1133 = vmatpush2.msra.mxu0 0.0
    %1134 = vmatprep.subr.mxu0 0.0
    %1135 = vmatpush2.msra.mxu0 0.0
    %1136 = vmatprep.subr.mxu0 0.0
    %1137 = vmatpush2.msra.mxu0 0.0
    %1138 = vmatprep.subr.mxu0 0.0
    %1139 = vmatpush2.msra.mxu0 0.0
    %1140 = vmatprep.subr.mxu0 0.0
    %1141 = vmatpush2.msra.mxu0 0.0
    %1142 = vmatprep.subr.mxu0 0.0
    %1143 = vmatpush2.msra.mxu0 0.0
    %1144 = vmatprep.subr.mxu0 0.0
    %1145 = vmatpush2.msra.mxu0 0.0
    %1146 = vmatprep.mubr.f32.mxu0 0.0
    %1147 = vmatmul.mubr.f32.gmra.mxu0 %v1080
    %v1148 = vpop.f32.mrf.mxu0
    %v1149 = vadd.f32 0.0, %v1148
    %v1150 = vpop.f32.mrf.mxu0
    %1151 = vdwg.mxu0
    %v1152 = vadd.f32 %v549, %v758
    %v1153 = vadd.f32 %v554, %v763
    %v1154 = vsel %vm164, %v1152, 0.0
    %v1155 = vsel %vm166, %v1153, 0.0
    %v1156 = vadd.f32 %v1154, %v1155
    %v1157 = vrot.slane %v1156, 4
    %v1158 = vadd.f32 %v1156, %v1157
    %v1159 = vrot.slane %v1158, 2
    %v1160 = vadd.f32 %v1158, %v1159
    %v1161 = vrot.slane %v1160, 1
    %v1162 = vadd.f32 %v1160, %v1161
    %v1163 = vsub.f32 %v1162, %v1153
    %v1164 = vmul.f32 %v1163, 0.035714287
    %v1165 = vsub.f32 %v1162, %v1152
    %v1166 = vmul.f32 %v1165, 0.035714287
    %v1167 = vadd.f32 %v559, %v768
    %v1168 = vadd.f32 %v564, %v773
    %v1172 = vrot.slane %v1153, 7
    %v1173 = vrot.slane %v1167, 7
    %v1174 = vsel %vm178, %v1172, %v1173
    %v1175 = vrot.slane %v1168, 7
    %v1176 = vsel %vm178, %v1173, %v1175
    %v1179 = vsel %vm164, %v1174, 0.0
    %v1180 = vsel %vm166, %v1176, 0.0
    %v1181 = vadd.f32 %v1179, %v1180
    %v1182 = vrot.slane %v1181, 4
    %v1183 = vadd.f32 %v1181, %v1182
    %v1184 = vrot.slane %v1183, 2
    %v1185 = vadd.f32 %v1183, %v1184
    %v1186 = vrot.slane %v1185, 1
    %v1187 = vadd.f32 %v1185, %v1186
    %v1188 = vsub.f32 %v1187, %v1168
    %v1189 = vmul.f32 %v1188, 0.035714287
    %v1190 = vsub.f32 %v1187, %v1153
    %v1191 = vmul.f32 %v1190, 0.035714287
    %v1193 = vrot.slane %v1166, 2
    %1194 = vrot.lane.b32.xlu0 %v1193, 32
    %v1195 = vpop.permute.xlu0 %1194
    %v1198 = vrot.slane %v1189, 7
    %1199 = vrot.lane.b32.xlu0 %v1198, 64
    %v1200 = vpop.permute.xlu0 %1199
    %v1203 = vrot.slane %v1191, 1
    %1204 = vrot.lane.b32.xlu0 %v1203, 96
    %v1205 = vpop.permute.xlu0 %1204
    %v1207 = vsel %vm164, %v1164, %v1195
    %v1208 = vsel %vm920, %v1207, %v1200
    %v1209 = vsel %vm922, %v1208, %v1205
    %s1210 = scalar_lea.vmem %s2, 128
    %v1211 = vld [vmem:[%s1210] sm:$0xff]
    %v1212 = vld [vmem:[%s1210 + $0x8] sm:$0xff]
    %v1213 = vld [vmem:[%s1210 + $0x10] sm:$0xff]
    %v1214 = vld [vmem:[%s1210 + $0x18] sm:$0xff]
    %v1215 = vld [vmem:[%s1210 + $0x20] sm:$0xff]
    %v1216 = vld [vmem:[%s1210 + $0x28] sm:$0xff]
    %v1217 = vld [vmem:[%s1210 + $0x30] sm:$0xff]
    %v1218 = vld [vmem:[%s1210 + $0x38] sm:$0xff]
    %v1219 = vld [vmem:[%s1210 + $0x40] sm:$0xff]
    %v1220 = vld [vmem:[%s1210 + $0x48] sm:$0xff]
    %v1221 = vld [vmem:[%s1210 + $0x50] sm:$0xff]
    %v1222 = vld [vmem:[%s1210 + $0x58] sm:$0xff]
    %v1223 = vld [vmem:[%s1210 + $0x60] sm:$0xff]
    %v1224 = vld [vmem:[%s1210 + $0x68] sm:$0xff]
    %v1225 = vld [vmem:[%s1210 + $0x70] sm:$0xff]
    %v1226 = vld [vmem:[%s1210 + $0x78] sm:$0xff]
    %v1228 = vrot.slane %v1209, 6
    %1230 = vmatprep.subr.mxu0 0.0
    %1231 = vmatpush1.msra.mxu0 %v1226
    %1232 = vmatprep.subr.mxu0 0.0
    %1233 = vmatpush1.msra.mxu0 %v1225
    %1234 = vmatprep.subr.mxu0 0.0
    %1235 = vmatpush1.msra.mxu0 %v1224
    %1236 = vmatprep.subr.mxu0 0.0
    %1237 = vmatpush1.msra.mxu0 %v1223
    %1238 = vmatprep.subr.mxu0 0.0
    %1239 = vmatpush1.msra.mxu0 %v1222
    %1240 = vmatprep.subr.mxu0 0.0
    %1241 = vmatpush1.msra.mxu0 %v1221
    %1242 = vmatprep.subr.mxu0 0.0
    %1243 = vmatpush1.msra.mxu0 %v1220
    %1244 = vmatprep.subr.mxu0 0.0
    %1245 = vmatpush1.msra.mxu0 %v1219
    %1246 = vmatprep.subr.mxu0 0.0
    %1247 = vmatpush1.msra.mxu0 %v1218
    %1248 = vmatprep.subr.mxu0 0.0
    %1249 = vmatpush1.msra.mxu0 %v1217
    %1250 = vmatprep.subr.mxu0 0.0
    %1251 = vmatpush1.msra.mxu0 %v1216
    %1252 = vmatprep.subr.mxu0 0.0
    %1253 = vmatpush1.msra.mxu0 %v1215
    %1254 = vmatprep.subr.mxu0 0.0
    %1255 = vmatpush1.msra.mxu0 %v1214
    %1256 = vmatprep.subr.mxu0 0.0
    %1257 = vmatpush1.msra.mxu0 %v1213
    %1258 = vmatprep.subr.mxu0 0.0
    %1259 = vmatpush1.msra.mxu0 %v1212
    %1260 = vmatprep.subr.mxu0 0.0
    %1261 = vmatpush1.msra.mxu0 %v1211
    %1262 = vmatprep.subr.mxu0 0.0
    %1263 = vmatpush2.msra.mxu0 0.0
    %1264 = vmatprep.subr.mxu0 0.0
    %1265 = vmatpush2.msra.mxu0 0.0
    %1266 = vmatprep.subr.mxu0 0.0
    %1267 = vmatpush2.msra.mxu0 0.0
    %1268 = vmatprep.subr.mxu0 0.0
    %1269 = vmatpush2.msra.mxu0 0.0
    %1270 = vmatprep.subr.mxu0 0.0
    %1271 = vmatpush2.msra.mxu0 0.0
    %1272 = vmatprep.subr.mxu0 0.0
    %1273 = vmatpush2.msra.mxu0 0.0
    %1274 = vmatprep.subr.mxu0 0.0
    %1275 = vmatpush2.msra.mxu0 0.0
    %1276 = vmatprep.subr.mxu0 0.0
    %1277 = vmatpush2.msra.mxu0 0.0
    %1278 = vmatprep.subr.mxu0 0.0
    %1279 = vmatpush2.msra.mxu0 0.0
    %1280 = vmatprep.subr.mxu0 0.0
    %1281 = vmatpush2.msra.mxu0 0.0
    %1282 = vmatprep.subr.mxu0 0.0
    %1283 = vmatpush2.msra.mxu0 0.0
    %1284 = vmatprep.subr.mxu0 0.0
    %1285 = vmatpush2.msra.mxu0 0.0
    %1286 = vmatprep.subr.mxu0 0.0
    %1287 = vmatpush2.msra.mxu0 0.0
    %1288 = vmatprep.subr.mxu0 0.0
    %1289 = vmatpush2.msra.mxu0 0.0
    %1290 = vmatprep.subr.mxu0 0.0
    %1291 = vmatpush2.msra.mxu0 0.0
    %1292 = vmatprep.subr.mxu0 0.0
    %1293 = vmatpush2.msra.mxu0 0.0
    %1294 = vmatprep.mubr.f32.mxu0 0.0
    %1295 = vmatmul.mubr.f32.gmra.mxu0 %v1228
    %v1296 = vpop.f32.mrf.mxu0
    %v1297 = vadd.f32 0.0, %v1296
    %v1298 = vpop.f32.mrf.mxu0
    %1299 = vdwg.mxu0
    %v1300 = vadd.f32 %v569, %v778
    %v1301 = vadd.f32 %v574, %v783
    %v1304 = vrot.slane %v1168, 6
    %v1305 = vrot.slane %v1300, 6
    %v1306 = vsel %vm199, %v1304, %v1305
    %v1307 = vrot.slane %v1301, 6
    %v1308 = vsel %vm199, %v1305, %v1307
    %v1311 = vsel %vm164, %v1306, 0.0
    %v1312 = vsel %vm166, %v1308, 0.0
    %v1313 = vadd.f32 %v1311, %v1312
    %v1314 = vrot.slane %v1313, 4
    %v1315 = vadd.f32 %v1313, %v1314
    %v1316 = vrot.slane %v1315, 2
    %v1317 = vadd.f32 %v1315, %v1316
    %v1318 = vrot.slane %v1317, 1
    %v1319 = vadd.f32 %v1317, %v1318
    %v1320 = vsub.f32 %v1319, %v1301
    %v1321 = vmul.f32 %v1320, 0.035714287
    %v1322 = vsub.f32 %v1319, %v1168
    %v1323 = vmul.f32 %v1322, 0.035714287
    %v1324 = vadd.f32 %v579, %v788
    %v1325 = vadd.f32 %v584, %v793
    %v1328 = vrot.slane %v1301, 5
    %v1329 = vrot.slane %v1324, 5
    %v1330 = vsel %vm218, %v1328, %v1329
    %v1331 = vrot.slane %v1325, 5
    %v1332 = vsel %vm218, %v1329, %v1331
    %v1335 = vsel %vm164, %v1330, 0.0
    %v1336 = vsel %vm166, %v1332, 0.0
    %v1337 = vadd.f32 %v1335, %v1336
    %v1338 = vrot.slane %v1337, 4
    %v1339 = vadd.f32 %v1337, %v1338
    %v1340 = vrot.slane %v1339, 2
    %v1341 = vadd.f32 %v1339, %v1340
    %v1342 = vrot.slane %v1341, 1
    %v1343 = vadd.f32 %v1341, %v1342
    %v1344 = vsub.f32 %v1343, %v1325
    %v1345 = vmul.f32 %v1344, 0.035714287
    %v1346 = vsub.f32 %v1343, %v1301
    %v1347 = vmul.f32 %v1346, 0.035714287
    %v1349 = vrot.slane %v1323, 2
    %1350 = vrot.lane.b32.xlu0 %v1349, 32
    %v1351 = vpop.permute.xlu0 %1350
    %v1354 = vrot.slane %v1345, 7
    %1355 = vrot.lane.b32.xlu0 %v1354, 64
    %v1356 = vpop.permute.xlu0 %1355
    %v1359 = vrot.slane %v1347, 1
    %1360 = vrot.lane.b32.xlu0 %v1359, 96
    %v1361 = vpop.permute.xlu0 %1360
    %v1363 = vsel %vm164, %v1321, %v1351
    %v1364 = vsel %vm920, %v1363, %v1356
    %v1365 = vsel %vm922, %v1364, %v1361
    %v1367 = vrot.slane %v1365, 4
    %1369 = vmatprep.subr.mxu0 0.0
    %1370 = vmatpush1.msra.mxu0 %v1226
    %1371 = vmatprep.subr.mxu0 0.0
    %1372 = vmatpush1.msra.mxu0 %v1225
    %1373 = vmatprep.subr.mxu0 0.0
    %1374 = vmatpush1.msra.mxu0 %v1224
    %1375 = vmatprep.subr.mxu0 0.0
    %1376 = vmatpush1.msra.mxu0 %v1223
    %1377 = vmatprep.subr.mxu0 0.0
    %1378 = vmatpush1.msra.mxu0 %v1222
    %1379 = vmatprep.subr.mxu0 0.0
    %1380 = vmatpush1.msra.mxu0 %v1221
    %1381 = vmatprep.subr.mxu0 0.0
    %1382 = vmatpush1.msra.mxu0 %v1220
    %1383 = vmatprep.subr.mxu0 0.0
    %1384 = vmatpush1.msra.mxu0 %v1219
    %1385 = vmatprep.subr.mxu0 0.0
    %1386 = vmatpush1.msra.mxu0 %v1218
    %1387 = vmatprep.subr.mxu0 0.0
    %1388 = vmatpush1.msra.mxu0 %v1217
    %1389 = vmatprep.subr.mxu0 0.0
    %1390 = vmatpush1.msra.mxu0 %v1216
    %1391 = vmatprep.subr.mxu0 0.0
    %1392 = vmatpush1.msra.mxu0 %v1215
    %1393 = vmatprep.subr.mxu0 0.0
    %1394 = vmatpush1.msra.mxu0 %v1214
    %1395 = vmatprep.subr.mxu0 0.0
    %1396 = vmatpush1.msra.mxu0 %v1213
    %1397 = vmatprep.subr.mxu0 0.0
    %1398 = vmatpush1.msra.mxu0 %v1212
    %1399 = vmatprep.subr.mxu0 0.0
    %1400 = vmatpush1.msra.mxu0 %v1211
    %1401 = vmatprep.subr.mxu0 0.0
    %1402 = vmatpush2.msra.mxu0 0.0
    %1403 = vmatprep.subr.mxu0 0.0
    %1404 = vmatpush2.msra.mxu0 0.0
    %1405 = vmatprep.subr.mxu0 0.0
    %1406 = vmatpush2.msra.mxu0 0.0
    %1407 = vmatprep.subr.mxu0 0.0
    %1408 = vmatpush2.msra.mxu0 0.0
    %1409 = vmatprep.subr.mxu0 0.0
    %1410 = vmatpush2.msra.mxu0 0.0
    %1411 = vmatprep.subr.mxu0 0.0
    %1412 = vmatpush2.msra.mxu0 0.0
    %1413 = vmatprep.subr.mxu0 0.0
    %1414 = vmatpush2.msra.mxu0 0.0
    %1415 = vmatprep.subr.mxu0 0.0
    %1416 = vmatpush2.msra.mxu0 0.0
    %1417 = vmatprep.subr.mxu0 0.0
    %1418 = vmatpush2.msra.mxu0 0.0
    %1419 = vmatprep.subr.mxu0 0.0
    %1420 = vmatpush2.msra.mxu0 0.0
    %1421 = vmatprep.subr.mxu0 0.0
    %1422 = vmatpush2.msra.mxu0 0.0
    %1423 = vmatprep.subr.mxu0 0.0
    %1424 = vmatpush2.msra.mxu0 0.0
    %1425 = vmatprep.subr.mxu0 0.0
    %1426 = vmatpush2.msra.mxu0 0.0
    %1427 = vmatprep.subr.mxu0 0.0
    %1428 = vmatpush2.msra.mxu0 0.0
    %1429 = vmatprep.subr.mxu0 0.0
    %1430 = vmatpush2.msra.mxu0 0.0
    %1431 = vmatprep.subr.mxu0 0.0
    %1432 = vmatpush2.msra.mxu0 0.0
    %1433 = vmatprep.mubr.f32.mxu0 0.0
    %1434 = vmatmul.mubr.f32.gmra.mxu0 %v1367
    %v1435 = vpop.f32.mrf.mxu0
    %v1436 = vadd.f32 0.0, %v1435
    %v1437 = vpop.f32.mrf.mxu0
    %1438 = vdwg.mxu0
    %1440 = vrot.lane.b32.xlu0 %v407, 32
    %v1441 = vpop.permute.xlu0 %1440
    %1444 = vrot.lane.b32.xlu0 %v616, 64
    %v1445 = vpop.permute.xlu0 %1444
    %1448 = vrot.lane.b32.xlu0 %v825, 96
    %v1449 = vpop.permute.xlu0 %1448
    %1452 = vrot.lane.b32.xlu0 %v1297, 32
    %v1453 = vpop.permute.xlu0 %1452
    %v1455 = vsel %vm164, %v196, %v1441
    %v1456 = vsel %vm920, %v1455, %v1445
    %v1457 = vsel %vm922, %v1456, %v1449
    %v1458 = vsel %vm164, %v1010, %v1453
    %v1459 = vadd.f32 %v196, %v407
    %v1460 = vadd.f32 %v1459, %v616
    %v1461 = vadd.f32 %v1460, %v825
    %v1462 = vmul.f32 %v1461, 0.25
    %v1463 = vadd.f32 %v1010, %v1297
    %v1464 = vmul.f32 %v1463, 0.5
    %1466 = vrot.lane.b32.xlu0 %v1464, 32
    %v1467 = vpop.permute.xlu0 %1466
    %v1469 = vsel %vm164, %v1462, %v1467
    %1471 = vrot.lane.b32.xlu0 %v445, 32
    %v1472 = vpop.permute.xlu0 %1471
    %1475 = vrot.lane.b32.xlu0 %v654, 64
    %v1476 = vpop.permute.xlu0 %1475
    %1479 = vrot.lane.b32.xlu0 %v863, 96
    %v1480 = vpop.permute.xlu0 %1479
    %1483 = vrot.lane.b32.xlu0 %v1436, 32
    %v1484 = vpop.permute.xlu0 %1483
    %v1486 = vsel %vm164, %v236, %v1472
    %v1487 = vsel %vm920, %v1486, %v1476
    %v1488 = vsel %vm922, %v1487, %v1480
    %v1489 = vsel %vm164, %v1149, %v1484
    %v1490 = vadd.f32 %v236, %v445
    %v1491 = vadd.f32 %v1490, %v654
    %v1492 = vadd.f32 %v1491, %v863
    %v1493 = vmul.f32 %v1492, 0.25
    %v1494 = vadd.f32 %v1149, %v1436
    %v1495 = vmul.f32 %v1494, 0.5
    %1497 = vrot.lane.b32.xlu0 %v1495, 32
    %v1498 = vpop.permute.xlu0 %1497
    %v1500 = vsel %vm164, %v1493, %v1498
    %v1503 = vrot.slane %v1488, 7
    %v1504 = vrot.slane %v1489, 7
    %v1507 = vsel %vm178, %v1457, %v1503
    %v1508 = vsel %vm178, %v1458, %v1504
    %v1511 = vcombine.low %v1507, %v1508
    %v1513 = vunpack.c.l.s4 1983009808
    %v1514 = vunpack.c.0.s8 %v1513
    %v1515 = vlaneseq
    %v1516 = vshrl.u32 %v1515, 7
    %v1517 = vsub.s32 %v1514, %v1516
    %v1518 = vrot.slane %v1511, %v1517
    %vm1520 = vcmask 519170
    %vm1521 = vmor %vm1520, %vm199
    %1522 = vst.msk [vmem:[#allocation2] sm:$0xf] %vm1521, %v1518
    %v1524 = vrot.slane %v1500, 7
    %v1526 = vsel %vm178, %v1469, %v1524
    %v1527 = vld [vmem:[%s3] sm:$0xff]
    %v1528 = vld [vmem:[%s3 + $0x8] sm:$0xff]
    %v1529 = vld [vmem:[%s3 + $0x10] sm:$0xff]
    %v1530 = vld [vmem:[%s3 + $0x18] sm:$0xff]
    %v1531 = vld [vmem:[%s3 + $0x20] sm:$0xff]
    %v1532 = vld [vmem:[%s3 + $0x28] sm:$0xff]
    %v1533 = vld [vmem:[%s3 + $0x30] sm:$0xff]
    %v1534 = vld [vmem:[%s3 + $0x38] sm:$0xff]
    %v1535 = vld [vmem:[%s4] sm:$0x1]
    %v1537 = vlaneseq
    %v1538 = vshrl.u32 %v1537, 7
    %v1539 = vsub.s32 0, %v1538
    %v1540 = vrot.slane %v1535, %v1539
    %v1543 = vsel %vm920, %v1526, 0
    %1545 = vmatprep.subr.mxu0 0.0
    %1546 = vmatpush1.msra.mxu0 0.0
    %1547 = vmatprep.subr.mxu0 0.0
    %1548 = vmatpush1.msra.mxu0 0.0
    %1549 = vmatprep.subr.mxu0 0.0
    %1550 = vmatpush1.msra.mxu0 0.0
    %1551 = vmatprep.subr.mxu0 0.0
    %1552 = vmatpush1.msra.mxu0 0.0
    %1553 = vmatprep.subr.mxu0 0.0
    %1554 = vmatpush1.msra.mxu0 0.0
    %1555 = vmatprep.subr.mxu0 0.0
    %1556 = vmatpush1.msra.mxu0 0.0
    %1557 = vmatprep.subr.mxu0 0.0
    %1558 = vmatpush1.msra.mxu0 0.0
    %1559 = vmatprep.subr.mxu0 0.0
    %1560 = vmatpush1.msra.mxu0 0.0
    %1561 = vmatprep.subr.mxu0 0.0
    %1562 = vmatpush1.msra.mxu0 %v1534
    %1563 = vmatprep.subr.mxu0 0.0
    %1564 = vmatpush1.msra.mxu0 %v1533
    %1565 = vmatprep.subr.mxu0 0.0
    %1566 = vmatpush1.msra.mxu0 %v1532
    %1567 = vmatprep.subr.mxu0 0.0
    %1568 = vmatpush1.msra.mxu0 %v1531
    %1569 = vmatprep.subr.mxu0 0.0
    %1570 = vmatpush1.msra.mxu0 %v1530
    %1571 = vmatprep.subr.mxu0 0.0
    %1572 = vmatpush1.msra.mxu0 %v1529
    %1573 = vmatprep.subr.mxu0 0.0
    %1574 = vmatpush1.msra.mxu0 %v1528
    %1575 = vmatprep.subr.mxu0 0.0
    %1576 = vmatpush1.msra.mxu0 %v1527
    %1577 = vmatprep.subr.mxu0 0.0
    %1578 = vmatpush2.msra.mxu0 0.0
    %1579 = vmatprep.subr.mxu0 0.0
    %1580 = vmatpush2.msra.mxu0 0.0
    %1581 = vmatprep.subr.mxu0 0.0
    %1582 = vmatpush2.msra.mxu0 0.0
    %1583 = vmatprep.subr.mxu0 0.0
    %1584 = vmatpush2.msra.mxu0 0.0
    %1585 = vmatprep.subr.mxu0 0.0
    %1586 = vmatpush2.msra.mxu0 0.0
    %1587 = vmatprep.subr.mxu0 0.0
    %1588 = vmatpush2.msra.mxu0 0.0
    %1589 = vmatprep.subr.mxu0 0.0
    %1590 = vmatpush2.msra.mxu0 0.0
    %1591 = vmatprep.subr.mxu0 0.0
    %1592 = vmatpush2.msra.mxu0 0.0
    %1593 = vmatprep.subr.mxu0 0.0
    %1594 = vmatpush2.msra.mxu0 0.0
    %1595 = vmatprep.subr.mxu0 0.0
    %1596 = vmatpush2.msra.mxu0 0.0
    %1597 = vmatprep.subr.mxu0 0.0
    %1598 = vmatpush2.msra.mxu0 0.0
    %1599 = vmatprep.subr.mxu0 0.0
    %1600 = vmatpush2.msra.mxu0 0.0
    %1601 = vmatprep.subr.mxu0 0.0
    %1602 = vmatpush2.msra.mxu0 0.0
    %1603 = vmatprep.subr.mxu0 0.0
    %1604 = vmatpush2.msra.mxu0 0.0
    %1605 = vmatprep.subr.mxu0 0.0
    %1606 = vmatpush2.msra.mxu0 0.0
    %1607 = vmatprep.subr.mxu0 0.0
    %1608 = vmatpush2.msra.mxu0 0.0
    %1609 = vmatprep.mubr.f32.mxu0 0.0
    %1610 = vmatmul.mubr.f32.gmra.mxu0 %v1543
    %v1611 = vpop.f32.mrf.mxu0
    %v1612 = vadd.f32 %v1540, %v1611
    %v1613 = vpop.f32.mrf.mxu0
    %1614 = vdwg.mxu0
    %vm1615 = vcmask 74752
    %1616 = vst.msk [vmem:[#allocation4] sm:$0x3] %vm1615, %v1612
    // Predicated region
    $region22: #{ppl_forward.1} parent=1 // pred_check
      _
    $region23: #{ppl_forward.1} parent=1 // pred_check_branch
      %1618 = sbr.rel (0) target = $region25
    $region24: #{ppl_forward.1} parent=1 // pred_region
      %s1620 = ssub.s32 64, 64
      %1621 = vsyncadd [#allocation3], %s1620
      %s1623 = sshll.u32 [#allocation2], 4
      %s1624 = int_to_ptr.vmem [resolvable:$true] %s1623
      %1626 = dma.vmem_to_hbm [thread:$0]  %s1624, 64, %s5, [#allocation3]
    $region25: #{ppl_forward.1} parent=1 // pred_fallthru
      _
    // Predicated region
    $region26: #{ppl_forward.1} parent=1 // pred_check
      _
    $region27: #{ppl_forward.1} parent=1 // pred_check_branch
      %1628 = sbr.rel (0) target = $region29
    $region28: #{ppl_forward.1} parent=1 // pred_region
      %s1630 = ssub.s32 32, 32
      %1631 = vsyncadd [#allocation5], %s1630
      %s1633 = sshll.u32 [#allocation4], 4
      %s1634 = int_to_ptr.vmem [resolvable:$true] %s1633
      %1636 = dma.vmem_to_hbm [thread:$0]  %s1634, 32, %s6, [#allocation5]
    $region29: #{ppl_forward.1} parent=1 // pred_fallthru
      _
    // Predicated region
    $region30: #{ppl_forward.1} parent=1 // pred_check
      _
    $region31: #{ppl_forward.1} parent=1 // pred_check_branch
      %1638 = sbr.rel (0) target = $region33
    $region32: #{ppl_forward.1} parent=1 // pred_region
      %1639 = dma.done [#allocation3], 64
    $region33: #{ppl_forward.1} parent=1 // pred_fallthru
      _
    // Predicated region
    $region34: #{ppl_forward.1} parent=1 // pred_check
      _
    $region35: #{ppl_forward.1} parent=1 // pred_check_branch
      %1641 = sbr.rel (0) target = $region37
    $region36: #{ppl_forward.1} parent=1 // pred_region
      %1642 = dma.done [#allocation5], 32
    $region37: #{ppl_forward.1} parent=1 // pred_fallthru
      _
    %1643 = vsyncpa [#allocation3], 1
    %1644 = vsyncpa [#allocation5], 1

</llo_original>
